<compile_context>
chip_gen: v5e
topology: v5e:2x2
jax: 0.10.0
libtpu: 0.0.40
codegen_flags: <defaults>
</compile_context>

<pallas_src>
import functools

import jax
import jax.numpy as jnp
import numpy as np
from jax.experimental import pallas as pl
from jax.experimental.pallas import tpu as pltpu

_MIB = 1024 * 1024


def _complex_conv_kernel(a_ref, b_ref, c_ref, br_ref, bi_ref, segpos_ref,
                         x_ref, out_ref, *, Cin, Cout, K, P, W, Wout,
                         same, gauss):
    """One (batch, row-block) tile of the complex 1xK convolution.

    a_ref, b_ref, c_ref : SMEM (Cout*Cin*K,) pre-combined weight scalars (f32)
        gauss form: A = w_re, B = -(w_re + w_im), C = (w_im - w_re)
        fma   form: A = w_re, B = -w_im,          C =  w_im
    br_ref, bi_ref : SMEM (Cout,) pre-combined biases (b_re -/+ b_im)
    segpos_ref     : VMEM (1, L) int32, lane position within a row segment
    x_ref          : VMEM (1, Cin, 2, TRg, L)      plane 0 = real, 1 = imag
    out_ref        : VMEM (1, Cout, 2, TRg, Lout)
    """
    f32 = jnp.float32
    TRg = x_ref.shape[3]
    L = x_ref.shape[4]

    # ---- Boundary masks: one per non-centre tap, shared by every channel. ----
    masks = {}
    if same:
        segpos = segpos_ref[...]                       # (1, L)
        for k in range(K):
            d = k - P                                  # tap offset along W
            if d == 0:
                continue
            cond = (segpos < (W - d)) if d > 0 else (segpos >= (-d))
            masks[d] = jnp.broadcast_to(cond, (TRg, L))

    # ---- Hoist the K shifted tap planes per input channel: reused across all
    # ---- output channels so only one (real, imag) accumulator pair is live. --
    xr_t, xi_t, s_t = [], [], []
    for ci in range(Cin):
        xr = x_ref[0, ci, 0].astype(f32)               # (TRg, L)
        xi = x_ref[0, ci, 1].astype(f32)
        if same:
            for k in range(K):
                d = k - P
                if d == 0:                             # aligned tap: no shift/mask
                    xr_k, xi_k = xr, xi
                else:
                    sh = (-d) % L                      # lane rotate on the XLU slot
                    xr_k = jnp.where(masks[d], pltpu.roll(xr, sh, 1), 0.0)
                    xi_k = jnp.where(masks[d], pltpu.roll(xi, sh, 1), 0.0)
                xr_t.append(xr_k)
                xi_t.append(xi_k)
                if gauss:
                    s_t.append(xr_k + xi_k)
        else:
            # TODO(synk): general Wout != W shapes keep the slower in-VMEM
            # zero-pad + slice scheme; only the default "same" conv uses rolls.
            if P > 0:
                z = jnp.zeros((TRg, P), f32)
                xr = jnp.concatenate([z, xr, z], axis=1)
                xi = jnp.concatenate([z, xi, z], axis=1)
            for k in range(K):
                xr_k = xr[:, k:k + Wout]
                xi_k = xi[:, k:k + Wout]
                xr_t.append(xr_k)
                xi_t.append(xi_k)
                if gauss:
                    s_t.append(xr_k + xi_k)

    # ---- co outermost: 2 live accumulators; bias folded into the store. ----
    for co in range(Cout):
        acc_r = None
        acc_i = None
        for ci in range(Cin):
            for k in range(K):
                t = ci * K + k
                w = (co * Cin + ci) * K + k
                a = a_ref[w]
                b = b_ref[w]
                c = c_ref[w]
                if gauss:
                    # 3-mult Gauss form (subtract-free; v5e/v6e have no f32 FMA):
                    #   p = w_re*(xr+xi); real += p - (w_re+w_im)*xi
                    #                     imag += p + (w_im-w_re)*xr
                    p = a * s_t[t]
                    tr = p + b * xi_t[t]
                    ti = p + c * xr_t[t]
                else:
                    # Pre-negated 4-FMA form (v7x fuses mul+add on the VALU).
                    tr = a * xr_t[t] + b * xi_t[t]
                    ti = a * xi_t[t] + c * xr_t[t]
                acc_r = tr if acc_r is None else acc_r + tr
                acc_i = ti if acc_i is None else acc_i + ti
        out_ref[0, co, 0] = (acc_r + br_ref[co]).astype(out_ref.dtype)
        out_ref[0, co, 1] = (acc_i + bi_ref[co]).astype(out_ref.dtype)


def _round_up(v, m):
    return ((v + m - 1) // m) * m


def _tpu_vmem_bytes():
    try:
        return int(pltpu.get_tpu_info().vmem_capacity_bytes)
    except Exception:
        return None


def _pick_step_budget():
    """Per-grid-step VMEM budget (double-buffered blocks + temporaries)."""
    vmem = _tpu_vmem_bytes()
    if vmem is not None and vmem <= 80 * _MIB:
        return 3 * _MIB            # v7x: 64 MiB VMEM per TensorCore
    return 7 * _MIB                # v5e/v6e: 128 MiB -> big tiles amortize step overhead


def _pick_vmem_limit():
    """Generation-aware scoped-VMEM limit with headroom below physical VMEM."""
    phys = _tpu_vmem_bytes()
    if not phys:
        return 48 * _MIB           # safe on v5e/v6e (128 MiB) and v7x (64 MiB)
    return max(32 * _MIB, min(96 * _MIB, (3 * phys) // 4))


def _prefer_gauss():
    """Gauss 3-mult form on chips without f32 VALU FMA (v5e/v6e)."""
    try:
        kind = jax.devices()[0].device_kind.lower()
    except Exception:
        return True
    return not ("v7" in kind or "tpu7" in kind)


def _pick_row_block(rows, row_bytes, sub, budget):
    """Largest TR with TR % sub == 0 and rows % TR == 0 under the VMEM budget.

    rows not a multiple of `sub` only reaches here when it is small (the
    wrapper pads large odd row counts), so the full-extent return stays cheap.
    """
    if rows % sub != 0:
        return rows
    best = sub
    for tr in range(sub, rows + 1, sub):
        if rows % tr == 0 and tr * row_bytes <= budget:
            best = tr
    return best


@functools.partial(jax.jit, static_argnames=("padding",))
def complex_conv(x, w_re, b_re, w_im, b_im, *, padding=1):
    """Pallas implementation of ComplexConv.forward.

    x          : (N, Cin, H, W)   NCHW, H even (real rows then imaginary rows)
    w_re, w_im : (Cout, Cin, 1, K)
    b_re, b_im : (Cout,)
    returns (N, Cout, H, W + 2*padding - K + 1)
    """
    # TODO(synk): only stride=1, dilation=1, groups=1 (the module defaults) are
    # implemented.
    N, Cin, H, W = x.shape
    Cout, Cin_w, kh, K = w_re.shape
    assert Cin_w == Cin and kh == 1, "weights must have shape (Cout, Cin, 1, K)"
    assert H % 2 == 0, "ComplexConv needs an even H (real/imaginary split)"
    P = int(padding)
    Hh = H // 2
    Wout = W + 2 * P - K + 1
    assert Wout >= 1, "kernel wider than padded input"
    same = (Wout == W)

    isz = jnp.dtype(x.dtype).itemsize
    sub = {4: 8, 2: 16, 1: 32}.get(isz, 8)        # dtype-aware sublane tile

    # Lane packing for small W (valid only for the "same" conv): fold G rows
    # into one lane row so stores/DMAs are lane-dense.  Free reshape.
    if same and W < 128:
        gmax = max(1, 128 // W)
        G = max(g for g in range(1, gmax + 1) if Hh % g == 0)
    else:
        G = 1
    Hg = Hh // G
    L = G * W
    Lout = L if same else Wout

    # Free reshape only: axis 2 = real/imag plane, last axis packs G rows of W.
    x5 = x.reshape(N, Cin, 2, Hg, L)

    # Pad the row-group axis to the sublane tile when it is large and odd, so
    # we never fall back to one giant block (v7x has only 64 MiB VMEM).
    Hg_pad = Hg
    if Hg % sub != 0 and Hg > 8 * sub:
        Hg_pad = _round_up(Hg, sub)
        x5 = jnp.pad(x5, ((0, 0), (0, 0), (0, 0), (0, Hg_pad - Hg), (0, 0)))

    # Pre-combined weight/bias scalars (SMEM): all bias/negation algebra is
    # hoisted out of the kernel.
    gauss = _prefer_gauss()
    wre = w_re.reshape(Cout * Cin * K).astype(jnp.float32)
    wim = w_im.reshape(Cout * Cin * K).astype(jnp.float32)
    if gauss:
        A, B, C = wre, -(wre + wim), wim - wre
    else:
        A, B, C = wre, -wim, wim
    br = (b_re - b_im).astype(jnp.float32)        # bias of the real plane
    bi = (b_re + b_im).astype(jnp.float32)        # bias of the imaginary plane
    segpos = jnp.asarray((np.arange(L) % W).astype(np.int32)).reshape(1, L)

    # Row block under a generation-aware per-step VMEM budget.  The footprint
    # counts double-buffered input+output blocks plus the in-kernel f32 tap
    # planes and the two live accumulators.
    Lp = _round_up(L, 128)
    Lop = _round_up(Lout, 128)
    temps = Cin * K * (3 if gauss else 2) + 4
    row_bytes = (2 * (Cin * 2 * Lp * isz)          # input block, double-buffered
                 + 2 * (Cout * 2 * Lop * isz)      # output block, double-buffered
                 + temps * Lop * 4)                # f32 tap planes + accumulators
    TRg = _pick_row_block(Hg_pad, row_bytes, sub, _pick_step_budget())

    # v7x megacore: keep >= 2 grid steps so both TensorCores get work.
    if N * (Hg_pad // TRg) < 2:
        for tr in range(TRg - sub, 0, -sub):
            if Hg_pad % tr == 0 and tr % sub == 0:
                TRg = tr
                break

    grid = (N, Hg_pad // TRg)

    kernel = functools.partial(_complex_conv_kernel, Cin=Cin, Cout=Cout, K=K,
                               P=P, W=W, Wout=Wout, same=same, gauss=gauss)

    smem = pl.BlockSpec(memory_space=pltpu.MemorySpace.SMEM)
    out5 = pl.pallas_call(
        kernel,
        out_shape=jax.ShapeDtypeStruct((N, Cout, 2, Hg_pad, Lout), x.dtype),
        grid_spec=pltpu.PrefetchScalarGridSpec(
            num_scalar_prefetch=0,
            grid=grid,
            in_specs=[
                smem, smem, smem, smem, smem,
                pl.BlockSpec((1, L), lambda n, r: (0, 0)),
                pl.BlockSpec((1, Cin, 2, TRg, L), lambda n, r: (n, 0, 0, r, 0)),
            ],
            out_specs=pl.BlockSpec((1, Cout, 2, TRg, Lout),
                                   lambda n, r: (n, 0, 0, r, 0)),
        ),
        compiler_params=pltpu.CompilerParams(
            dimension_semantics=("parallel", "parallel"),
            vmem_limit_bytes=_pick_vmem_limit()),
    )(A, B, C, br, bi, segpos, x5)

    if Hg_pad != Hg:
        out5 = out5[:, :, :, :Hg, :]
    # (N, Cout, 2, Hg, Lout) -> (N, Cout, H, Wout): the real/imag concat along
    # H and the lane un-packing are exactly this contiguous (free) reshape.
    return out5.reshape(N, Cout, H, Wout)


# ---------------- pure-JAX reference (mirrors the PyTorch module) ----------------
def _conv2d_ref(x, w, b, padding):
    out = jax.lax.conv_general_dilated(
        x, w, window_strides=(1, 1),
        padding=((0, 0), (padding, padding)),
        dimension_numbers=("NCHW", "OIHW", "NCHW"))
    return out + b[None, :, None, None]


def complex_conv_ref(x, w_re, b_re, w_im, b_im, padding=1):
    H = x.shape[2]
    x_real = x[:, :, :H // 2, :]
    x_imag = x[:, :, H // 2:H, :]
    real = _conv2d_ref(x_real, w_re, b_re, padding) - _conv2d_ref(x_imag, w_im, b_im, padding)
    imag = _conv2d_ref(x_imag, w_re, b_re, padding) + _conv2d_ref(x_real, w_im, b_im, padding)
    return jnp.concatenate([real, imag], axis=2)


if __name__ == "__main__":
    # Small shapes consistent with the module: batch=2, in_channels=4,
    # out_channels=4, H=16 (8 real + 8 imaginary rows), W=16, K=3, P=1.
    N, Cin, Cout, H, W, K, P = 2, 4, 4, 16, 16, 3, 1

    key = jax.random.PRNGKey(0)
    kx, kwr, kbr, kwi, kbi = jax.random.split(key, 5)

    x = jax.random.normal(kx, (N, Cin, H, W), dtype=jnp.float32)

    # Deterministic parameter init (PyTorch Conv2d-style uniform bound).
    fan_in = Cin * 1 * K
    bound = 1.0 / np.sqrt(fan_in)
    w_re = jax.random.uniform(kwr, (Cout, Cin, 1, K), jnp.float32, -bound, bound)
    b_re = jax.random.uniform(kbr, (Cout,), jnp.float32, -bound, bound)
    w_im = jax.random.uniform(kwi, (Cout, Cin, 1, K), jnp.float32, -bound, bound)
    b_im = jax.random.uniform(kbi, (Cout,), jnp.float32, -bound, bound)

    out = complex_conv(x, w_re, b_re, w_im, b_im, padding=P)
    out = jax.block_until_ready(out)

    ref = complex_conv_ref(x, w_re, b_re, w_im, b_im, padding=P)
    ref = jax.block_until_ready(ref)

    assert out.shape == (N, Cout, H, W + 2 * P - K + 1), out.shape
    np.testing.assert_allclose(np.asarray(out), np.asarray(ref), rtol=1e-5, atol=1e-5)

    print("KERNEL_OK")
</pallas_src>

<mosaic_0001>
module attributes {stable_mosaic.version = 11 : i64} {
  func.func @_complex_conv_kernel(%arg0: i32, %arg1: i32, %arg2: memref<48xf32, #tpu.memory_space<smem>>, %arg3: memref<48xf32, #tpu.memory_space<smem>>, %arg4: memref<48xf32, #tpu.memory_space<smem>>, %arg5: memref<4xf32, #tpu.memory_space<smem>>, %arg6: memref<4xf32, #tpu.memory_space<smem>>, %arg7: memref<1x128xi32, #tpu.memory_space<vmem>>, %arg8: memref<1x4x2x1x128xf32, #tpu.memory_space<vmem>>, %arg9: memref<1x4x2x1x128xf32, #tpu.memory_space<vmem>>) attributes {dimension_semantics = [#tpu.dimension_semantics<parallel>, #tpu.dimension_semantics<parallel>], iteration_bounds = array<i64: 2, 1>, scalar_prefetch = 0 : i64, scratch_operands = 0 : i64, tpu.core_type = #tpu.core_type<tc>, window_params = [{transform_indices = @transform_0, window_bounds = array<i64: 48>}, {transform_indices = @transform_1, window_bounds = array<i64: 48>}, {transform_indices = @transform_2, window_bounds = array<i64: 48>}, {transform_indices = @transform_3, window_bounds = array<i64: 4>}, {transform_indices = @transform_4, window_bounds = array<i64: 4>}, {pipeline_mode = #tpu.pipeline_mode<synchronous>, transform_indices = @transform_5, window_bounds = array<i64: 1, 128>}, {transform_indices = @transform_6, window_bounds = array<i64: 1, 4, 2, 1, 128>}, {transform_indices = @transform_7, window_bounds = array<i64: 1, 4, 2, 1, 128>}]} {
    %c0 = arith.constant 0 : index
    %c0_0 = arith.constant 0 : index
    %0 = vector.load %arg7[%c0, %c0_0] : memref<1x128xi32, #tpu.memory_space<vmem>>, vector<1x128xi32>
    %c1_i32 = arith.constant 1 : i32
    %1 = vector.broadcast %c1_i32 : i32 to vector<1x128xi32>
    %2 = arith.cmpi sge, %0, %1 : vector<1x128xi32>
    %c15_i32 = arith.constant 15 : i32
    %3 = vector.broadcast %c15_i32 : i32 to vector<1x128xi32>
    %4 = arith.cmpi slt, %0, %3 : vector<1x128xi32>
    %c0_1 = arith.constant 0 : index
    %c0_2 = arith.constant 0 : index
    %c0_3 = arith.constant 0 : index
    %c0_4 = arith.constant 0 : index
    %c0_5 = arith.constant 0 : index
    %5 = vector.load %arg8[%c0_1, %c0_2, %c0_3, %c0_4, %c0_5] : memref<1x4x2x1x128xf32, #tpu.memory_space<vmem>>, vector<1x1x1x1x128xf32>
    %6 = vector.shape_cast %5 : vector<1x1x1x1x128xf32> to vector<1x128xf32>
    %c0_6 = arith.constant 0 : index
    %c0_7 = arith.constant 0 : index
    %c1 = arith.constant 1 : index
    %c0_8 = arith.constant 0 : index
    %c0_9 = arith.constant 0 : index
    %7 = vector.load %arg8[%c0_6, %c0_7, %c1, %c0_8, %c0_9] : memref<1x4x2x1x128xf32, #tpu.memory_space<vmem>>, vector<1x1x1x1x128xf32>
    %8 = vector.shape_cast %7 : vector<1x1x1x1x128xf32> to vector<1x128xf32>
    %c1_i32_10 = arith.constant 1 : i32
    %9 = tpu.dynamic_rotate %6 by %c1_i32_10 dim 1 : vector<1x128xf32>, i32 -> vector<1x128xf32>
    %cst = arith.constant 0.000000e+00 : f32
    %10 = vector.broadcast %cst : f32 to vector<1x128xf32>
    %11 = arith.select %2, %9, %10 : vector<1x128xi1>, vector<1x128xf32>
    %c1_i32_11 = arith.constant 1 : i32
    %12 = tpu.dynamic_rotate %8 by %c1_i32_11 dim 1 : vector<1x128xf32>, i32 -> vector<1x128xf32>
    %cst_12 = arith.constant 0.000000e+00 : f32
    %13 = vector.broadcast %cst_12 : f32 to vector<1x128xf32>
    %14 = arith.select %2, %12, %13 : vector<1x128xi1>, vector<1x128xf32>
    %15 = arith.addf %11, %14 : vector<1x128xf32>
    %16 = arith.addf %6, %8 : vector<1x128xf32>
    %c127_i32 = arith.constant 127 : i32
    %17 = tpu.dynamic_rotate %6 by %c127_i32 dim 1 : vector<1x128xf32>, i32 -> vector<1x128xf32>
    %cst_13 = arith.constant 0.000000e+00 : f32
    %18 = vector.broadcast %cst_13 : f32 to vector<1x128xf32>
    %19 = arith.select %4, %17, %18 : vector<1x128xi1>, vector<1x128xf32>
    %c127_i32_14 = arith.constant 127 : i32
    %20 = tpu.dynamic_rotate %8 by %c127_i32_14 dim 1 : vector<1x128xf32>, i32 -> vector<1x128xf32>
    %cst_15 = arith.constant 0.000000e+00 : f32
    %21 = vector.broadcast %cst_15 : f32 to vector<1x128xf32>
    %22 = arith.select %4, %20, %21 : vector<1x128xi1>, vector<1x128xf32>
    %23 = arith.addf %19, %22 : vector<1x128xf32>
    %c0_16 = arith.constant 0 : index
    %c1_17 = arith.constant 1 : index
    %c0_18 = arith.constant 0 : index
    %c0_19 = arith.constant 0 : index
    %c0_20 = arith.constant 0 : index
    %24 = vector.load %arg8[%c0_16, %c1_17, %c0_18, %c0_19, %c0_20] : memref<1x4x2x1x128xf32, #tpu.memory_space<vmem>>, vector<1x1x1x1x128xf32>
    %25 = vector.shape_cast %24 : vector<1x1x1x1x128xf32> to vector<1x128xf32>
    %c0_21 = arith.constant 0 : index
    %c1_22 = arith.constant 1 : index
    %c1_23 = arith.constant 1 : index
    %c0_24 = arith.constant 0 : index
    %c0_25 = arith.constant 0 : index
    %26 = vector.load %arg8[%c0_21, %c1_22, %c1_23, %c0_24, %c0_25] : memref<1x4x2x1x128xf32, #tpu.memory_space<vmem>>, vector<1x1x1x1x128xf32>
    %27 = vector.shape_cast %26 : vector<1x1x1x1x128xf32> to vector<1x128xf32>
    %c1_i32_26 = arith.constant 1 : i32
    %28 = tpu.dynamic_rotate %25 by %c1_i32_26 dim 1 : vector<1x128xf32>, i32 -> vector<1x128xf32>
    %cst_27 = arith.constant 0.000000e+00 : f32
    %29 = vector.broadcast %cst_27 : f32 to vector<1x128xf32>
    %30 = arith.select %2, %28, %29 : vector<1x128xi1>, vector<1x128xf32>
    %c1_i32_28 = arith.constant 1 : i32
    %31 = tpu.dynamic_rotate %27 by %c1_i32_28 dim 1 : vector<1x128xf32>, i32 -> vector<1x128xf32>
    %cst_29 = arith.constant 0.000000e+00 : f32
    %32 = vector.broadcast %cst_29 : f32 to vector<1x128xf32>
    %33 = arith.select %2, %31, %32 : vector<1x128xi1>, vector<1x128xf32>
    %34 = arith.addf %30, %33 : vector<1x128xf32>
    %35 = arith.addf %25, %27 : vector<1x128xf32>
    %c127_i32_30 = arith.constant 127 : i32
    %36 = tpu.dynamic_rotate %25 by %c127_i32_30 dim 1 : vector<1x128xf32>, i32 -> vector<1x128xf32>
    %cst_31 = arith.constant 0.000000e+00 : f32
    %37 = vector.broadcast %cst_31 : f32 to vector<1x128xf32>
    %38 = arith.select %4, %36, %37 : vector<1x128xi1>, vector<1x128xf32>
    %c127_i32_32 = arith.constant 127 : i32
    %39 = tpu.dynamic_rotate %27 by %c127_i32_32 dim 1 : vector<1x128xf32>, i32 -> vector<1x128xf32>
    %cst_33 = arith.constant 0.000000e+00 : f32
    %40 = vector.broadcast %cst_33 : f32 to vector<1x128xf32>
    %41 = arith.select %4, %39, %40 : vector<1x128xi1>, vector<1x128xf32>
    %42 = arith.addf %38, %41 : vector<1x128xf32>
    %c0_34 = arith.constant 0 : index
    %c2 = arith.constant 2 : index
    %c0_35 = arith.constant 0 : index
    %c0_36 = arith.constant 0 : index
    %c0_37 = arith.constant 0 : index
    %43 = vector.load %arg8[%c0_34, %c2, %c0_35, %c0_36, %c0_37] : memref<1x4x2x1x128xf32, #tpu.memory_space<vmem>>, vector<1x1x1x1x128xf32>
    %44 = vector.shape_cast %43 : vector<1x1x1x1x128xf32> to vector<1x128xf32>
    %c0_38 = arith.constant 0 : index
    %c2_39 = arith.constant 2 : index
    %c1_40 = arith.constant 1 : index
    %c0_41 = arith.constant 0 : index
    %c0_42 = arith.constant 0 : index
    %45 = vector.load %arg8[%c0_38, %c2_39, %c1_40, %c0_41, %c0_42] : memref<1x4x2x1x128xf32, #tpu.memory_space<vmem>>, vector<1x1x1x1x128xf32>
    %46 = vector.shape_cast %45 : vector<1x1x1x1x128xf32> to vector<1x128xf32>
    %c1_i32_43 = arith.constant 1 : i32
    %47 = tpu.dynamic_rotate %44 by %c1_i32_43 dim 1 : vector<1x128xf32>, i32 -> vector<1x128xf32>
    %cst_44 = arith.constant 0.000000e+00 : f32
    %48 = vector.broadcast %cst_44 : f32 to vector<1x128xf32>
    %49 = arith.select %2, %47, %48 : vector<1x128xi1>, vector<1x128xf32>
    %c1_i32_45 = arith.constant 1 : i32
    %50 = tpu.dynamic_rotate %46 by %c1_i32_45 dim 1 : vector<1x128xf32>, i32 -> vector<1x128xf32>
    %cst_46 = arith.constant 0.000000e+00 : f32
    %51 = vector.broadcast %cst_46 : f32 to vector<1x128xf32>
    %52 = arith.select %2, %50, %51 : vector<1x128xi1>, vector<1x128xf32>
    %53 = arith.addf %49, %52 : vector<1x128xf32>
    %54 = arith.addf %44, %46 : vector<1x128xf32>
    %c127_i32_47 = arith.constant 127 : i32
    %55 = tpu.dynamic_rotate %44 by %c127_i32_47 dim 1 : vector<1x128xf32>, i32 -> vector<1x128xf32>
    %cst_48 = arith.constant 0.000000e+00 : f32
    %56 = vector.broadcast %cst_48 : f32 to vector<1x128xf32>
    %57 = arith.select %4, %55, %56 : vector<1x128xi1>, vector<1x128xf32>
    %c127_i32_49 = arith.constant 127 : i32
    %58 = tpu.dynamic_rotate %46 by %c127_i32_49 dim 1 : vector<1x128xf32>, i32 -> vector<1x128xf32>
    %cst_50 = arith.constant 0.000000e+00 : f32
    %59 = vector.broadcast %cst_50 : f32 to vector<1x128xf32>
    %60 = arith.select %4, %58, %59 : vector<1x128xi1>, vector<1x128xf32>
    %61 = arith.addf %57, %60 : vector<1x128xf32>
    %c0_51 = arith.constant 0 : index
    %c3 = arith.constant 3 : index
    %c0_52 = arith.constant 0 : index
    %c0_53 = arith.constant 0 : index
    %c0_54 = arith.constant 0 : index
    %62 = vector.load %arg8[%c0_51, %c3, %c0_52, %c0_53, %c0_54] : memref<1x4x2x1x128xf32, #tpu.memory_space<vmem>>, vector<1x1x1x1x128xf32>
    %63 = vector.shape_cast %62 : vector<1x1x1x1x128xf32> to vector<1x128xf32>
    %c0_55 = arith.constant 0 : index
    %c3_56 = arith.constant 3 : index
    %c1_57 = arith.constant 1 : index
    %c0_58 = arith.constant 0 : index
    %c0_59 = arith.constant 0 : index
    %64 = vector.load %arg8[%c0_55, %c3_56, %c1_57, %c0_58, %c0_59] : memref<1x4x2x1x128xf32, #tpu.memory_space<vmem>>, vector<1x1x1x1x128xf32>
    %65 = vector.shape_cast %64 : vector<1x1x1x1x128xf32> to vector<1x128xf32>
    %c1_i32_60 = arith.constant 1 : i32
    %66 = tpu.dynamic_rotate %63 by %c1_i32_60 dim 1 : vector<1x128xf32>, i32 -> vector<1x128xf32>
    %cst_61 = arith.constant 0.000000e+00 : f32
    %67 = vector.broadcast %cst_61 : f32 to vector<1x128xf32>
    %68 = arith.select %2, %66, %67 : vector<1x128xi1>, vector<1x128xf32>
    %c1_i32_62 = arith.constant 1 : i32
    %69 = tpu.dynamic_rotate %65 by %c1_i32_62 dim 1 : vector<1x128xf32>, i32 -> vector<1x128xf32>
    %cst_63 = arith.constant 0.000000e+00 : f32
    %70 = vector.broadcast %cst_63 : f32 to vector<1x128xf32>
    %71 = arith.select %2, %69, %70 : vector<1x128xi1>, vector<1x128xf32>
    %72 = arith.addf %68, %71 : vector<1x128xf32>
    %73 = arith.addf %63, %65 : vector<1x128xf32>
    %c127_i32_64 = arith.constant 127 : i32
    %74 = tpu.dynamic_rotate %63 by %c127_i32_64 dim 1 : vector<1x128xf32>, i32 -> vector<1x128xf32>
    %cst_65 = arith.constant 0.000000e+00 : f32
    %75 = vector.broadcast %cst_65 : f32 to vector<1x128xf32>
    %76 = arith.select %4, %74, %75 : vector<1x128xi1>, vector<1x128xf32>
    %c127_i32_66 = arith.constant 127 : i32
    %77 = tpu.dynamic_rotate %65 by %c127_i32_66 dim 1 : vector<1x128xf32>, i32 -> vector<1x128xf32>
    %cst_67 = arith.constant 0.000000e+00 : f32
    %78 = vector.broadcast %cst_67 : f32 to vector<1x128xf32>
    %79 = arith.select %4, %77, %78 : vector<1x128xi1>, vector<1x128xf32>
    %80 = arith.addf %76, %79 : vector<1x128xf32>
    %c0_68 = arith.constant 0 : index
    %81 = memref.load %arg2[%c0_68] : memref<48xf32, #tpu.memory_space<smem>>
    %c0_69 = arith.constant 0 : index
    %82 = memref.load %arg3[%c0_69] : memref<48xf32, #tpu.memory_space<smem>>
    %c0_70 = arith.constant 0 : index
    %83 = memref.load %arg4[%c0_70] : memref<48xf32, #tpu.memory_space<smem>>
    %84 = vector.broadcast %81 : f32 to vector<1x128xf32>
    %85 = arith.mulf %84, %15 : vector<1x128xf32>
    %86 = vector.broadcast %82 : f32 to vector<1x128xf32>
    %87 = arith.mulf %86, %14 : vector<1x128xf32>
    %88 = arith.addf %85, %87 : vector<1x128xf32>
    %89 = vector.broadcast %83 : f32 to vector<1x128xf32>
    %90 = arith.mulf %89, %11 : vector<1x128xf32>
    %91 = arith.addf %85, %90 : vector<1x128xf32>
    %c1_71 = arith.constant 1 : index
    %92 = memref.load %arg2[%c1_71] : memref<48xf32, #tpu.memory_space<smem>>
    %c1_72 = arith.constant 1 : index
    %93 = memref.load %arg3[%c1_72] : memref<48xf32, #tpu.memory_space<smem>>
    %c1_73 = arith.constant 1 : index
    %94 = memref.load %arg4[%c1_73] : memref<48xf32, #tpu.memory_space<smem>>
    %95 = vector.broadcast %92 : f32 to vector<1x128xf32>
    %96 = arith.mulf %95, %16 : vector<1x128xf32>
    %97 = vector.broadcast %93 : f32 to vector<1x128xf32>
    %98 = arith.mulf %97, %8 : vector<1x128xf32>
    %99 = arith.addf %96, %98 : vector<1x128xf32>
    %100 = vector.broadcast %94 : f32 to vector<1x128xf32>
    %101 = arith.mulf %100, %6 : vector<1x128xf32>
    %102 = arith.addf %96, %101 : vector<1x128xf32>
    %103 = arith.addf %88, %99 : vector<1x128xf32>
    %104 = arith.addf %91, %102 : vector<1x128xf32>
    %c2_74 = arith.constant 2 : index
    %105 = memref.load %arg2[%c2_74] : memref<48xf32, #tpu.memory_space<smem>>
    %c2_75 = arith.constant 2 : index
    %106 = memref.load %arg3[%c2_75] : memref<48xf32, #tpu.memory_space<smem>>
    %c2_76 = arith.constant 2 : index
    %107 = memref.load %arg4[%c2_76] : memref<48xf32, #tpu.memory_space<smem>>
    %108 = vector.broadcast %105 : f32 to vector<1x128xf32>
    %109 = arith.mulf %108, %23 : vector<1x128xf32>
    %110 = vector.broadcast %106 : f32 to vector<1x128xf32>
    %111 = arith.mulf %110, %22 : vector<1x128xf32>
    %112 = arith.addf %109, %111 : vector<1x128xf32>
    %113 = vector.broadcast %107 : f32 to vector<1x128xf32>
    %114 = arith.mulf %113, %19 : vector<1x128xf32>
    %115 = arith.addf %109, %114 : vector<1x128xf32>
    %116 = arith.addf %103, %112 : vector<1x128xf32>
    %117 = arith.addf %104, %115 : vector<1x128xf32>
    %c3_77 = arith.constant 3 : index
    %118 = memref.load %arg2[%c3_77] : memref<48xf32, #tpu.memory_space<smem>>
    %c3_78 = arith.constant 3 : index
    %119 = memref.load %arg3[%c3_78] : memref<48xf32, #tpu.memory_space<smem>>
    %c3_79 = arith.constant 3 : index
    %120 = memref.load %arg4[%c3_79] : memref<48xf32, #tpu.memory_space<smem>>
    %121 = vector.broadcast %118 : f32 to vector<1x128xf32>
    %122 = arith.mulf %121, %34 : vector<1x128xf32>
    %123 = vector.broadcast %119 : f32 to vector<1x128xf32>
    %124 = arith.mulf %123, %33 : vector<1x128xf32>
    %125 = arith.addf %122, %124 : vector<1x128xf32>
    %126 = vector.broadcast %120 : f32 to vector<1x128xf32>
    %127 = arith.mulf %126, %30 : vector<1x128xf32>
    %128 = arith.addf %122, %127 : vector<1x128xf32>
    %129 = arith.addf %116, %125 : vector<1x128xf32>
    %130 = arith.addf %117, %128 : vector<1x128xf32>
    %c4 = arith.constant 4 : index
    %131 = memref.load %arg2[%c4] : memref<48xf32, #tpu.memory_space<smem>>
    %c4_80 = arith.constant 4 : index
    %132 = memref.load %arg3[%c4_80] : memref<48xf32, #tpu.memory_space<smem>>
    %c4_81 = arith.constant 4 : index
    %133 = memref.load %arg4[%c4_81] : memref<48xf32, #tpu.memory_space<smem>>
    %134 = vector.broadcast %131 : f32 to vector<1x128xf32>
    %135 = arith.mulf %134, %35 : vector<1x128xf32>
    %136 = vector.broadcast %132 : f32 to vector<1x128xf32>
    %137 = arith.mulf %136, %27 : vector<1x128xf32>
    %138 = arith.addf %135, %137 : vector<1x128xf32>
    %139 = vector.broadcast %133 : f32 to vector<1x128xf32>
    %140 = arith.mulf %139, %25 : vector<1x128xf32>
    %141 = arith.addf %135, %140 : vector<1x128xf32>
    %142 = arith.addf %129, %138 : vector<1x128xf32>
    %143 = arith.addf %130, %141 : vector<1x128xf32>
    %c5 = arith.constant 5 : index
    %144 = memref.load %arg2[%c5] : memref<48xf32, #tpu.memory_space<smem>>
    %c5_82 = arith.constant 5 : index
    %145 = memref.load %arg3[%c5_82] : memref<48xf32, #tpu.memory_space<smem>>
    %c5_83 = arith.constant 5 : index
    %146 = memref.load %arg4[%c5_83] : memref<48xf32, #tpu.memory_space<smem>>
    %147 = vector.broadcast %144 : f32 to vector<1x128xf32>
    %148 = arith.mulf %147, %42 : vector<1x128xf32>
    %149 = vector.broadcast %145 : f32 to vector<1x128xf32>
    %150 = arith.mulf %149, %41 : vector<1x128xf32>
    %151 = arith.addf %148, %150 : vector<1x128xf32>
    %152 = vector.broadcast %146 : f32 to vector<1x128xf32>
    %153 = arith.mulf %152, %38 : vector<1x128xf32>
    %154 = arith.addf %148, %153 : vector<1x128xf32>
    %155 = arith.addf %142, %151 : vector<1x128xf32>
    %156 = arith.addf %143, %154 : vector<1x128xf32>
    %c6 = arith.constant 6 : index
    %157 = memref.load %arg2[%c6] : memref<48xf32, #tpu.memory_space<smem>>
    %c6_84 = arith.constant 6 : index
    %158 = memref.load %arg3[%c6_84] : memref<48xf32, #tpu.memory_space<smem>>
    %c6_85 = arith.constant 6 : index
    %159 = memref.load %arg4[%c6_85] : memref<48xf32, #tpu.memory_space<smem>>
    %160 = vector.broadcast %157 : f32 to vector<1x128xf32>
    %161 = arith.mulf %160, %53 : vector<1x128xf32>
    %162 = vector.broadcast %158 : f32 to vector<1x128xf32>
    %163 = arith.mulf %162, %52 : vector<1x128xf32>
    %164 = arith.addf %161, %163 : vector<1x128xf32>
    %165 = vector.broadcast %159 : f32 to vector<1x128xf32>
    %166 = arith.mulf %165, %49 : vector<1x128xf32>
    %167 = arith.addf %161, %166 : vector<1x128xf32>
    %168 = arith.addf %155, %164 : vector<1x128xf32>
    %169 = arith.addf %156, %167 : vector<1x128xf32>
    %c7 = arith.constant 7 : index
    %170 = memref.load %arg2[%c7] : memref<48xf32, #tpu.memory_space<smem>>
    %c7_86 = arith.constant 7 : index
    %171 = memref.load %arg3[%c7_86] : memref<48xf32, #tpu.memory_space<smem>>
    %c7_87 = arith.constant 7 : index
    %172 = memref.load %arg4[%c7_87] : memref<48xf32, #tpu.memory_space<smem>>
    %173 = vector.broadcast %170 : f32 to vector<1x128xf32>
    %174 = arith.mulf %173, %54 : vector<1x128xf32>
    %175 = vector.broadcast %171 : f32 to vector<1x128xf32>
    %176 = arith.mulf %175, %46 : vector<1x128xf32>
    %177 = arith.addf %174, %176 : vector<1x128xf32>
    %178 = vector.broadcast %172 : f32 to vector<1x128xf32>
    %179 = arith.mulf %178, %44 : vector<1x128xf32>
    %180 = arith.addf %174, %179 : vector<1x128xf32>
    %181 = arith.addf %168, %177 : vector<1x128xf32>
    %182 = arith.addf %169, %180 : vector<1x128xf32>
    %c8 = arith.constant 8 : index
    %183 = memref.load %arg2[%c8] : memref<48xf32, #tpu.memory_space<smem>>
    %c8_88 = arith.constant 8 : index
    %184 = memref.load %arg3[%c8_88] : memref<48xf32, #tpu.memory_space<smem>>
    %c8_89 = arith.constant 8 : index
    %185 = memref.load %arg4[%c8_89] : memref<48xf32, #tpu.memory_space<smem>>
    %186 = vector.broadcast %183 : f32 to vector<1x128xf32>
    %187 = arith.mulf %186, %61 : vector<1x128xf32>
    %188 = vector.broadcast %184 : f32 to vector<1x128xf32>
    %189 = arith.mulf %188, %60 : vector<1x128xf32>
    %190 = arith.addf %187, %189 : vector<1x128xf32>
    %191 = vector.broadcast %185 : f32 to vector<1x128xf32>
    %192 = arith.mulf %191, %57 : vector<1x128xf32>
    %193 = arith.addf %187, %192 : vector<1x128xf32>
    %194 = arith.addf %181, %190 : vector<1x128xf32>
    %195 = arith.addf %182, %193 : vector<1x128xf32>
    %c9 = arith.constant 9 : index
    %196 = memref.load %arg2[%c9] : memref<48xf32, #tpu.memory_space<smem>>
    %c9_90 = arith.constant 9 : index
    %197 = memref.load %arg3[%c9_90] : memref<48xf32, #tpu.memory_space<smem>>
    %c9_91 = arith.constant 9 : index
    %198 = memref.load %arg4[%c9_91] : memref<48xf32, #tpu.memory_space<smem>>
    %199 = vector.broadcast %196 : f32 to vector<1x128xf32>
    %200 = arith.mulf %199, %72 : vector<1x128xf32>
    %201 = vector.broadcast %197 : f32 to vector<1x128xf32>
    %202 = arith.mulf %201, %71 : vector<1x128xf32>
    %203 = arith.addf %200, %202 : vector<1x128xf32>
    %204 = vector.broadcast %198 : f32 to vector<1x128xf32>
    %205 = arith.mulf %204, %68 : vector<1x128xf32>
    %206 = arith.addf %200, %205 : vector<1x128xf32>
    %207 = arith.addf %194, %203 : vector<1x128xf32>
    %208 = arith.addf %195, %206 : vector<1x128xf32>
    %c10 = arith.constant 10 : index
    %209 = memref.load %arg2[%c10] : memref<48xf32, #tpu.memory_space<smem>>
    %c10_92 = arith.constant 10 : index
    %210 = memref.load %arg3[%c10_92] : memref<48xf32, #tpu.memory_space<smem>>
    %c10_93 = arith.constant 10 : index
    %211 = memref.load %arg4[%c10_93] : memref<48xf32, #tpu.memory_space<smem>>
    %212 = vector.broadcast %209 : f32 to vector<1x128xf32>
    %213 = arith.mulf %212, %73 : vector<1x128xf32>
    %214 = vector.broadcast %210 : f32 to vector<1x128xf32>
    %215 = arith.mulf %214, %65 : vector<1x128xf32>
    %216 = arith.addf %213, %215 : vector<1x128xf32>
    %217 = vector.broadcast %211 : f32 to vector<1x128xf32>
    %218 = arith.mulf %217, %63 : vector<1x128xf32>
    %219 = arith.addf %213, %218 : vector<1x128xf32>
    %220 = arith.addf %207, %216 : vector<1x128xf32>
    %221 = arith.addf %208, %219 : vector<1x128xf32>
    %c11 = arith.constant 11 : index
    %222 = memref.load %arg2[%c11] : memref<48xf32, #tpu.memory_space<smem>>
    %c11_94 = arith.constant 11 : index
    %223 = memref.load %arg3[%c11_94] : memref<48xf32, #tpu.memory_space<smem>>
    %c11_95 = arith.constant 11 : index
    %224 = memref.load %arg4[%c11_95] : memref<48xf32, #tpu.memory_space<smem>>
    %225 = vector.broadcast %222 : f32 to vector<1x128xf32>
    %226 = arith.mulf %225, %80 : vector<1x128xf32>
    %227 = vector.broadcast %223 : f32 to vector<1x128xf32>
    %228 = arith.mulf %227, %79 : vector<1x128xf32>
    %229 = arith.addf %226, %228 : vector<1x128xf32>
    %230 = vector.broadcast %224 : f32 to vector<1x128xf32>
    %231 = arith.mulf %230, %76 : vector<1x128xf32>
    %232 = arith.addf %226, %231 : vector<1x128xf32>
    %233 = arith.addf %220, %229 : vector<1x128xf32>
    %234 = arith.addf %221, %232 : vector<1x128xf32>
    %c0_96 = arith.constant 0 : index
    %235 = memref.load %arg5[%c0_96] : memref<4xf32, #tpu.memory_space<smem>>
    %236 = vector.broadcast %235 : f32 to vector<1x128xf32>
    %237 = arith.addf %233, %236 : vector<1x128xf32>
    %c0_97 = arith.constant 0 : index
    %c0_98 = arith.constant 0 : index
    %c0_99 = arith.constant 0 : index
    %c0_100 = arith.constant 0 : index
    %c0_101 = arith.constant 0 : index
    %238 = vector.load %arg9[%c0_97, %c0_98, %c0_99, %c0_100, %c0_101] : memref<1x4x2x1x128xf32, #tpu.memory_space<vmem>>, vector<1x1x1x1x128xf32>
    %239 = vector.shape_cast %238 : vector<1x1x1x1x128xf32> to vector<1x128xf32>
    %240 = vector.shape_cast %237 : vector<1x128xf32> to vector<1x1x1x1x128xf32>
    tpu.vector_store %arg9[%c0_97, %c0_98, %c0_99, %c0_100, %c0_101], %240 {strides = array<i32>} : memref<1x4x2x1x128xf32, #tpu.memory_space<vmem>>, vector<1x1x1x1x128xf32>,
    %c0_102 = arith.constant 0 : index
    %241 = memref.load %arg6[%c0_102] : memref<4xf32, #tpu.memory_space<smem>>
    %242 = vector.broadcast %241 : f32 to vector<1x128xf32>
    %243 = arith.addf %234, %242 : vector<1x128xf32>
    %c0_103 = arith.constant 0 : index
    %c0_104 = arith.constant 0 : index
    %c1_105 = arith.constant 1 : index
    %c0_106 = arith.constant 0 : index
    %c0_107 = arith.constant 0 : index
    %244 = vector.load %arg9[%c0_103, %c0_104, %c1_105, %c0_106, %c0_107] : memref<1x4x2x1x128xf32, #tpu.memory_space<vmem>>, vector<1x1x1x1x128xf32>
    %245 = vector.shape_cast %244 : vector<1x1x1x1x128xf32> to vector<1x128xf32>
    %246 = vector.shape_cast %243 : vector<1x128xf32> to vector<1x1x1x1x128xf32>
    tpu.vector_store %arg9[%c0_103, %c0_104, %c1_105, %c0_106, %c0_107], %246 {strides = array<i32>} : memref<1x4x2x1x128xf32, #tpu.memory_space<vmem>>, vector<1x1x1x1x128xf32>,
    %c12 = arith.constant 12 : index
    %247 = memref.load %arg2[%c12] : memref<48xf32, #tpu.memory_space<smem>>
    %c12_108 = arith.constant 12 : index
    %248 = memref.load %arg3[%c12_108] : memref<48xf32, #tpu.memory_space<smem>>
    %c12_109 = arith.constant 12 : index
    %249 = memref.load %arg4[%c12_109] : memref<48xf32, #tpu.memory_space<smem>>
    %250 = vector.broadcast %247 : f32 to vector<1x128xf32>
    %251 = arith.mulf %250, %15 : vector<1x128xf32>
    %252 = vector.broadcast %248 : f32 to vector<1x128xf32>
    %253 = arith.mulf %252, %14 : vector<1x128xf32>
    %254 = arith.addf %251, %253 : vector<1x128xf32>
    %255 = vector.broadcast %249 : f32 to vector<1x128xf32>
    %256 = arith.mulf %255, %11 : vector<1x128xf32>
    %257 = arith.addf %251, %256 : vector<1x128xf32>
    %c13 = arith.constant 13 : index
    %258 = memref.load %arg2[%c13] : memref<48xf32, #tpu.memory_space<smem>>
    %c13_110 = arith.constant 13 : index
    %259 = memref.load %arg3[%c13_110] : memref<48xf32, #tpu.memory_space<smem>>
    %c13_111 = arith.constant 13 : index
    %260 = memref.load %arg4[%c13_111] : memref<48xf32, #tpu.memory_space<smem>>
    %261 = vector.broadcast %258 : f32 to vector<1x128xf32>
    %262 = arith.mulf %261, %16 : vector<1x128xf32>
    %263 = vector.broadcast %259 : f32 to vector<1x128xf32>
    %264 = arith.mulf %263, %8 : vector<1x128xf32>
    %265 = arith.addf %262, %264 : vector<1x128xf32>
    %266 = vector.broadcast %260 : f32 to vector<1x128xf32>
    %267 = arith.mulf %266, %6 : vector<1x128xf32>
    %268 = arith.addf %262, %267 : vector<1x128xf32>
    %269 = arith.addf %254, %265 : vector<1x128xf32>
    %270 = arith.addf %257, %268 : vector<1x128xf32>
    %c14 = arith.constant 14 : index
    %271 = memref.load %arg2[%c14] : memref<48xf32, #tpu.memory_space<smem>>
    %c14_112 = arith.constant 14 : index
    %272 = memref.load %arg3[%c14_112] : memref<48xf32, #tpu.memory_space<smem>>
    %c14_113 = arith.constant 14 : index
    %273 = memref.load %arg4[%c14_113] : memref<48xf32, #tpu.memory_space<smem>>
    %274 = vector.broadcast %271 : f32 to vector<1x128xf32>
    %275 = arith.mulf %274, %23 : vector<1x128xf32>
    %276 = vector.broadcast %272 : f32 to vector<1x128xf32>
    %277 = arith.mulf %276, %22 : vector<1x128xf32>
    %278 = arith.addf %275, %277 : vector<1x128xf32>
    %279 = vector.broadcast %273 : f32 to vector<1x128xf32>
    %280 = arith.mulf %279, %19 : vector<1x128xf32>
    %281 = arith.addf %275, %280 : vector<1x128xf32>
    %282 = arith.addf %269, %278 : vector<1x128xf32>
    %283 = arith.addf %270, %281 : vector<1x128xf32>
    %c15 = arith.constant 15 : index
    %284 = memref.load %arg2[%c15] : memref<48xf32, #tpu.memory_space<smem>>
    %c15_114 = arith.constant 15 : index
    %285 = memref.load %arg3[%c15_114] : memref<48xf32, #tpu.memory_space<smem>>
    %c15_115 = arith.constant 15 : index
    %286 = memref.load %arg4[%c15_115] : memref<48xf32, #tpu.memory_space<smem>>
    %287 = vector.broadcast %284 : f32 to vector<1x128xf32>
    %288 = arith.mulf %287, %34 : vector<1x128xf32>
    %289 = vector.broadcast %285 : f32 to vector<1x128xf32>
    %290 = arith.mulf %289, %33 : vector<1x128xf32>
    %291 = arith.addf %288, %290 : vector<1x128xf32>
    %292 = vector.broadcast %286 : f32 to vector<1x128xf32>
    %293 = arith.mulf %292, %30 : vector<1x128xf32>
    %294 = arith.addf %288, %293 : vector<1x128xf32>
    %295 = arith.addf %282, %291 : vector<1x128xf32>
    %296 = arith.addf %283, %294 : vector<1x128xf32>
    %c16 = arith.constant 16 : index
    %297 = memref.load %arg2[%c16] : memref<48xf32, #tpu.memory_space<smem>>
    %c16_116 = arith.constant 16 : index
    %298 = memref.load %arg3[%c16_116] : memref<48xf32, #tpu.memory_space<smem>>
    %c16_117 = arith.constant 16 : index
    %299 = memref.load %arg4[%c16_117] : memref<48xf32, #tpu.memory_space<smem>>
    %300 = vector.broadcast %297 : f32 to vector<1x128xf32>
    %301 = arith.mulf %300, %35 : vector<1x128xf32>
    %302 = vector.broadcast %298 : f32 to vector<1x128xf32>
    %303 = arith.mulf %302, %27 : vector<1x128xf32>
    %304 = arith.addf %301, %303 : vector<1x128xf32>
    %305 = vector.broadcast %299 : f32 to vector<1x128xf32>
    %306 = arith.mulf %305, %25 : vector<1x128xf32>
    %307 = arith.addf %301, %306 : vector<1x128xf32>
    %308 = arith.addf %295, %304 : vector<1x128xf32>
    %309 = arith.addf %296, %307 : vector<1x128xf32>
    %c17 = arith.constant 17 : index
    %310 = memref.load %arg2[%c17] : memref<48xf32, #tpu.memory_space<smem>>
    %c17_118 = arith.constant 17 : index
    %311 = memref.load %arg3[%c17_118] : memref<48xf32, #tpu.memory_space<smem>>
    %c17_119 = arith.constant 17 : index
    %312 = memref.load %arg4[%c17_119] : memref<48xf32, #tpu.memory_space<smem>>
    %313 = vector.broadcast %310 : f32 to vector<1x128xf32>
    %314 = arith.mulf %313, %42 : vector<1x128xf32>
    %315 = vector.broadcast %311 : f32 to vector<1x128xf32>
    %316 = arith.mulf %315, %41 : vector<1x128xf32>
    %317 = arith.addf %314, %316 : vector<1x128xf32>
    %318 = vector.broadcast %312 : f32 to vector<1x128xf32>
    %319 = arith.mulf %318, %38 : vector<1x128xf32>
    %320 = arith.addf %314, %319 : vector<1x128xf32>
    %321 = arith.addf %308, %317 : vector<1x128xf32>
    %322 = arith.addf %309, %320 : vector<1x128xf32>
    %c18 = arith.constant 18 : index
    %323 = memref.load %arg2[%c18] : memref<48xf32, #tpu.memory_space<smem>>
    %c18_120 = arith.constant 18 : index
    %324 = memref.load %arg3[%c18_120] : memref<48xf32, #tpu.memory_space<smem>>
    %c18_121 = arith.constant 18 : index
    %325 = memref.load %arg4[%c18_121] : memref<48xf32, #tpu.memory_space<smem>>
    %326 = vector.broadcast %323 : f32 to vector<1x128xf32>
    %327 = arith.mulf %326, %53 : vector<1x128xf32>
    %328 = vector.broadcast %324 : f32 to vector<1x128xf32>
    %329 = arith.mulf %328, %52 : vector<1x128xf32>
    %330 = arith.addf %327, %329 : vector<1x128xf32>
    %331 = vector.broadcast %325 : f32 to vector<1x128xf32>
    %332 = arith.mulf %331, %49 : vector<1x128xf32>
    %333 = arith.addf %327, %332 : vector<1x128xf32>
    %334 = arith.addf %321, %330 : vector<1x128xf32>
    %335 = arith.addf %322, %333 : vector<1x128xf32>
    %c19 = arith.constant 19 : index
    %336 = memref.load %arg2[%c19] : memref<48xf32, #tpu.memory_space<smem>>
    %c19_122 = arith.constant 19 : index
    %337 = memref.load %arg3[%c19_122] : memref<48xf32, #tpu.memory_space<smem>>
    %c19_123 = arith.constant 19 : index
    %338 = memref.load %arg4[%c19_123] : memref<48xf32, #tpu.memory_space<smem>>
    %339 = vector.broadcast %336 : f32 to vector<1x128xf32>
    %340 = arith.mulf %339, %54 : vector<1x128xf32>
    %341 = vector.broadcast %337 : f32 to vector<1x128xf32>
    %342 = arith.mulf %341, %46 : vector<1x128xf32>
    %343 = arith.addf %340, %342 : vector<1x128xf32>
    %344 = vector.broadcast %338 : f32 to vector<1x128xf32>
    %345 = arith.mulf %344, %44 : vector<1x128xf32>
    %346 = arith.addf %340, %345 : vector<1x128xf32>
    %347 = arith.addf %334, %343 : vector<1x128xf32>
    %348 = arith.addf %335, %346 : vector<1x128xf32>
    %c20 = arith.constant 20 : index
    %349 = memref.load %arg2[%c20] : memref<48xf32, #tpu.memory_space<smem>>
    %c20_124 = arith.constant 20 : index
    %350 = memref.load %arg3[%c20_124] : memref<48xf32, #tpu.memory_space<smem>>
    %c20_125 = arith.constant 20 : index
    %351 = memref.load %arg4[%c20_125] : memref<48xf32, #tpu.memory_space<smem>>
    %352 = vector.broadcast %349 : f32 to vector<1x128xf32>
    %353 = arith.mulf %352, %61 : vector<1x128xf32>
    %354 = vector.broadcast %350 : f32 to vector<1x128xf32>
    %355 = arith.mulf %354, %60 : vector<1x128xf32>
    %356 = arith.addf %353, %355 : vector<1x128xf32>
    %357 = vector.broadcast %351 : f32 to vector<1x128xf32>
    %358 = arith.mulf %357, %57 : vector<1x128xf32>
    %359 = arith.addf %353, %358 : vector<1x128xf32>
    %360 = arith.addf %347, %356 : vector<1x128xf32>
    %361 = arith.addf %348, %359 : vector<1x128xf32>
    %c21 = arith.constant 21 : index
    %362 = memref.load %arg2[%c21] : memref<48xf32, #tpu.memory_space<smem>>
    %c21_126 = arith.constant 21 : index
    %363 = memref.load %arg3[%c21_126] : memref<48xf32, #tpu.memory_space<smem>>
    %c21_127 = arith.constant 21 : index
    %364 = memref.load %arg4[%c21_127] : memref<48xf32, #tpu.memory_space<smem>>
    %365 = vector.broadcast %362 : f32 to vector<1x128xf32>
    %366 = arith.mulf %365, %72 : vector<1x128xf32>
    %367 = vector.broadcast %363 : f32 to vector<1x128xf32>
    %368 = arith.mulf %367, %71 : vector<1x128xf32>
    %369 = arith.addf %366, %368 : vector<1x128xf32>
    %370 = vector.broadcast %364 : f32 to vector<1x128xf32>
    %371 = arith.mulf %370, %68 : vector<1x128xf32>
    %372 = arith.addf %366, %371 : vector<1x128xf32>
    %373 = arith.addf %360, %369 : vector<1x128xf32>
    %374 = arith.addf %361, %372 : vector<1x128xf32>
    %c22 = arith.constant 22 : index
    %375 = memref.load %arg2[%c22] : memref<48xf32, #tpu.memory_space<smem>>
    %c22_128 = arith.constant 22 : index
    %376 = memref.load %arg3[%c22_128] : memref<48xf32, #tpu.memory_space<smem>>
    %c22_129 = arith.constant 22 : index
    %377 = memref.load %arg4[%c22_129] : memref<48xf32, #tpu.memory_space<smem>>
    %378 = vector.broadcast %375 : f32 to vector<1x128xf32>
    %379 = arith.mulf %378, %73 : vector<1x128xf32>
    %380 = vector.broadcast %376 : f32 to vector<1x128xf32>
    %381 = arith.mulf %380, %65 : vector<1x128xf32>
    %382 = arith.addf %379, %381 : vector<1x128xf32>
    %383 = vector.broadcast %377 : f32 to vector<1x128xf32>
    %384 = arith.mulf %383, %63 : vector<1x128xf32>
    %385 = arith.addf %379, %384 : vector<1x128xf32>
    %386 = arith.addf %373, %382 : vector<1x128xf32>
    %387 = arith.addf %374, %385 : vector<1x128xf32>
    %c23 = arith.constant 23 : index
    %388 = memref.load %arg2[%c23] : memref<48xf32, #tpu.memory_space<smem>>
    %c23_130 = arith.constant 23 : index
    %389 = memref.load %arg3[%c23_130] : memref<48xf32, #tpu.memory_space<smem>>
    %c23_131 = arith.constant 23 : index
    %390 = memref.load %arg4[%c23_131] : memref<48xf32, #tpu.memory_space<smem>>
    %391 = vector.broadcast %388 : f32 to vector<1x128xf32>
    %392 = arith.mulf %391, %80 : vector<1x128xf32>
    %393 = vector.broadcast %389 : f32 to vector<1x128xf32>
    %394 = arith.mulf %393, %79 : vector<1x128xf32>
    %395 = arith.addf %392, %394 : vector<1x128xf32>
    %396 = vector.broadcast %390 : f32 to vector<1x128xf32>
    %397 = arith.mulf %396, %76 : vector<1x128xf32>
    %398 = arith.addf %392, %397 : vector<1x128xf32>
    %399 = arith.addf %386, %395 : vector<1x128xf32>
    %400 = arith.addf %387, %398 : vector<1x128xf32>
    %c1_132 = arith.constant 1 : index
    %401 = memref.load %arg5[%c1_132] : memref<4xf32, #tpu.memory_space<smem>>
    %402 = vector.broadcast %401 : f32 to vector<1x128xf32>
    %403 = arith.addf %399, %402 : vector<1x128xf32>
    %c0_133 = arith.constant 0 : index
    %c1_134 = arith.constant 1 : index
    %c0_135 = arith.constant 0 : index
    %c0_136 = arith.constant 0 : index
    %c0_137 = arith.constant 0 : index
    %404 = vector.load %arg9[%c0_133, %c1_134, %c0_135, %c0_136, %c0_137] : memref<1x4x2x1x128xf32, #tpu.memory_space<vmem>>, vector<1x1x1x1x128xf32>
    %405 = vector.shape_cast %404 : vector<1x1x1x1x128xf32> to vector<1x128xf32>
    %406 = vector.shape_cast %403 : vector<1x128xf32> to vector<1x1x1x1x128xf32>
    tpu.vector_store %arg9[%c0_133, %c1_134, %c0_135, %c0_136, %c0_137], %406 {strides = array<i32>} : memref<1x4x2x1x128xf32, #tpu.memory_space<vmem>>, vector<1x1x1x1x128xf32>,
    %c1_138 = arith.constant 1 : index
    %407 = memref.load %arg6[%c1_138] : memref<4xf32, #tpu.memory_space<smem>>
    %408 = vector.broadcast %407 : f32 to vector<1x128xf32>
    %409 = arith.addf %400, %408 : vector<1x128xf32>
    %c0_139 = arith.constant 0 : index
    %c1_140 = arith.constant 1 : index
    %c1_141 = arith.constant 1 : index
    %c0_142 = arith.constant 0 : index
    %c0_143 = arith.constant 0 : index
    %410 = vector.load %arg9[%c0_139, %c1_140, %c1_141, %c0_142, %c0_143] : memref<1x4x2x1x128xf32, #tpu.memory_space<vmem>>, vector<1x1x1x1x128xf32>
    %411 = vector.shape_cast %410 : vector<1x1x1x1x128xf32> to vector<1x128xf32>
    %412 = vector.shape_cast %409 : vector<1x128xf32> to vector<1x1x1x1x128xf32>
    tpu.vector_store %arg9[%c0_139, %c1_140, %c1_141, %c0_142, %c0_143], %412 {strides = array<i32>} : memref<1x4x2x1x128xf32, #tpu.memory_space<vmem>>, vector<1x1x1x1x128xf32>,
    %c24 = arith.constant 24 : index
    %413 = memref.load %arg2[%c24] : memref<48xf32, #tpu.memory_space<smem>>
    %c24_144 = arith.constant 24 : index
    %414 = memref.load %arg3[%c24_144] : memref<48xf32, #tpu.memory_space<smem>>
    %c24_145 = arith.constant 24 : index
    %415 = memref.load %arg4[%c24_145] : memref<48xf32, #tpu.memory_space<smem>>
    %416 = vector.broadcast %413 : f32 to vector<1x128xf32>
    %417 = arith.mulf %416, %15 : vector<1x128xf32>
    %418 = vector.broadcast %414 : f32 to vector<1x128xf32>
    %419 = arith.mulf %418, %14 : vector<1x128xf32>
    %420 = arith.addf %417, %419 : vector<1x128xf32>
    %421 = vector.broadcast %415 : f32 to vector<1x128xf32>
    %422 = arith.mulf %421, %11 : vector<1x128xf32>
    %423 = arith.addf %417, %422 : vector<1x128xf32>
    %c25 = arith.constant 25 : index
    %424 = memref.load %arg2[%c25] : memref<48xf32, #tpu.memory_space<smem>>
    %c25_146 = arith.constant 25 : index
    %425 = memref.load %arg3[%c25_146] : memref<48xf32, #tpu.memory_space<smem>>
    %c25_147 = arith.constant 25 : index
    %426 = memref.load %arg4[%c25_147] : memref<48xf32, #tpu.memory_space<smem>>
    %427 = vector.broadcast %424 : f32 to vector<1x128xf32>
    %428 = arith.mulf %427, %16 : vector<1x128xf32>
    %429 = vector.broadcast %425 : f32 to vector<1x128xf32>
    %430 = arith.mulf %429, %8 : vector<1x128xf32>
    %431 = arith.addf %428, %430 : vector<1x128xf32>
    %432 = vector.broadcast %426 : f32 to vector<1x128xf32>
    %433 = arith.mulf %432, %6 : vector<1x128xf32>
    %434 = arith.addf %428, %433 : vector<1x128xf32>
    %435 = arith.addf %420, %431 : vector<1x128xf32>
    %436 = arith.addf %423, %434 : vector<1x128xf32>
    %c26 = arith.constant 26 : index
    %437 = memref.load %arg2[%c26] : memref<48xf32, #tpu.memory_space<smem>>
    %c26_148 = arith.constant 26 : index
    %438 = memref.load %arg3[%c26_148] : memref<48xf32, #tpu.memory_space<smem>>
    %c26_149 = arith.constant 26 : index
    %439 = memref.load %arg4[%c26_149] : memref<48xf32, #tpu.memory_space<smem>>
    %440 = vector.broadcast %437 : f32 to vector<1x128xf32>
    %441 = arith.mulf %440, %23 : vector<1x128xf32>
    %442 = vector.broadcast %438 : f32 to vector<1x128xf32>
    %443 = arith.mulf %442, %22 : vector<1x128xf32>
    %444 = arith.addf %441, %443 : vector<1x128xf32>
    %445 = vector.broadcast %439 : f32 to vector<1x128xf32>
    %446 = arith.mulf %445, %19 : vector<1x128xf32>
    %447 = arith.addf %441, %446 : vector<1x128xf32>
    %448 = arith.addf %435, %444 : vector<1x128xf32>
    %449 = arith.addf %436, %447 : vector<1x128xf32>
    %c27 = arith.constant 27 : index
    %450 = memref.load %arg2[%c27] : memref<48xf32, #tpu.memory_space<smem>>
    %c27_150 = arith.constant 27 : index
    %451 = memref.load %arg3[%c27_150] : memref<48xf32, #tpu.memory_space<smem>>
    %c27_151 = arith.constant 27 : index
    %452 = memref.load %arg4[%c27_151] : memref<48xf32, #tpu.memory_space<smem>>
    %453 = vector.broadcast %450 : f32 to vector<1x128xf32>
    %454 = arith.mulf %453, %34 : vector<1x128xf32>
    %455 = vector.broadcast %451 : f32 to vector<1x128xf32>
    %456 = arith.mulf %455, %33 : vector<1x128xf32>
    %457 = arith.addf %454, %456 : vector<1x128xf32>
    %458 = vector.broadcast %452 : f32 to vector<1x128xf32>
    %459 = arith.mulf %458, %30 : vector<1x128xf32>
    %460 = arith.addf %454, %459 : vector<1x128xf32>
    %461 = arith.addf %448, %457 : vector<1x128xf32>
    %462 = arith.addf %449, %460 : vector<1x128xf32>
    %c28 = arith.constant 28 : index
    %463 = memref.load %arg2[%c28] : memref<48xf32, #tpu.memory_space<smem>>
    %c28_152 = arith.constant 28 : index
    %464 = memref.load %arg3[%c28_152] : memref<48xf32, #tpu.memory_space<smem>>
    %c28_153 = arith.constant 28 : index
    %465 = memref.load %arg4[%c28_153] : memref<48xf32, #tpu.memory_space<smem>>
    %466 = vector.broadcast %463 : f32 to vector<1x128xf32>
    %467 = arith.mulf %466, %35 : vector<1x128xf32>
    %468 = vector.broadcast %464 : f32 to vector<1x128xf32>
    %469 = arith.mulf %468, %27 : vector<1x128xf32>
    %470 = arith.addf %467, %469 : vector<1x128xf32>
    %471 = vector.broadcast %465 : f32 to vector<1x128xf32>
    %472 = arith.mulf %471, %25 : vector<1x128xf32>
    %473 = arith.addf %467, %472 : vector<1x128xf32>
    %474 = arith.addf %461, %470 : vector<1x128xf32>
    %475 = arith.addf %462, %473 : vector<1x128xf32>
    %c29 = arith.constant 29 : index
    %476 = memref.load %arg2[%c29] : memref<48xf32, #tpu.memory_space<smem>>
    %c29_154 = arith.constant 29 : index
    %477 = memref.load %arg3[%c29_154] : memref<48xf32, #tpu.memory_space<smem>>
    %c29_155 = arith.constant 29 : index
    %478 = memref.load %arg4[%c29_155] : memref<48xf32, #tpu.memory_space<smem>>
    %479 = vector.broadcast %476 : f32 to vector<1x128xf32>
    %480 = arith.mulf %479, %42 : vector<1x128xf32>
    %481 = vector.broadcast %477 : f32 to vector<1x128xf32>
    %482 = arith.mulf %481, %41 : vector<1x128xf32>
    %483 = arith.addf %480, %482 : vector<1x128xf32>
    %484 = vector.broadcast %478 : f32 to vector<1x128xf32>
    %485 = arith.mulf %484, %38 : vector<1x128xf32>
    %486 = arith.addf %480, %485 : vector<1x128xf32>
    %487 = arith.addf %474, %483 : vector<1x128xf32>
    %488 = arith.addf %475, %486 : vector<1x128xf32>
    %c30 = arith.constant 30 : index
    %489 = memref.load %arg2[%c30] : memref<48xf32, #tpu.memory_space<smem>>
    %c30_156 = arith.constant 30 : index
    %490 = memref.load %arg3[%c30_156] : memref<48xf32, #tpu.memory_space<smem>>
    %c30_157 = arith.constant 30 : index
    %491 = memref.load %arg4[%c30_157] : memref<48xf32, #tpu.memory_space<smem>>
    %492 = vector.broadcast %489 : f32 to vector<1x128xf32>
    %493 = arith.mulf %492, %53 : vector<1x128xf32>
    %494 = vector.broadcast %490 : f32 to vector<1x128xf32>
    %495 = arith.mulf %494, %52 : vector<1x128xf32>
    %496 = arith.addf %493, %495 : vector<1x128xf32>
    %497 = vector.broadcast %491 : f32 to vector<1x128xf32>
    %498 = arith.mulf %497, %49 : vector<1x128xf32>
    %499 = arith.addf %493, %498 : vector<1x128xf32>
    %500 = arith.addf %487, %496 : vector<1x128xf32>
    %501 = arith.addf %488, %499 : vector<1x128xf32>
    %c31 = arith.constant 31 : index
    %502 = memref.load %arg2[%c31] : memref<48xf32, #tpu.memory_space<smem>>
    %c31_158 = arith.constant 31 : index
    %503 = memref.load %arg3[%c31_158] : memref<48xf32, #tpu.memory_space<smem>>
    %c31_159 = arith.constant 31 : index
    %504 = memref.load %arg4[%c31_159] : memref<48xf32, #tpu.memory_space<smem>>
    %505 = vector.broadcast %502 : f32 to vector<1x128xf32>
    %506 = arith.mulf %505, %54 : vector<1x128xf32>
    %507 = vector.broadcast %503 : f32 to vector<1x128xf32>
    %508 = arith.mulf %507, %46 : vector<1x128xf32>
    %509 = arith.addf %506, %508 : vector<1x128xf32>
    %510 = vector.broadcast %504 : f32 to vector<1x128xf32>
    %511 = arith.mulf %510, %44 : vector<1x128xf32>
    %512 = arith.addf %506, %511 : vector<1x128xf32>
    %513 = arith.addf %500, %509 : vector<1x128xf32>
    %514 = arith.addf %501, %512 : vector<1x128xf32>
    %c32 = arith.constant 32 : index
    %515 = memref.load %arg2[%c32] : memref<48xf32, #tpu.memory_space<smem>>
    %c32_160 = arith.constant 32 : index
    %516 = memref.load %arg3[%c32_160] : memref<48xf32, #tpu.memory_space<smem>>
    %c32_161 = arith.constant 32 : index
    %517 = memref.load %arg4[%c32_161] : memref<48xf32, #tpu.memory_space<smem>>
    %518 = vector.broadcast %515 : f32 to vector<1x128xf32>
    %519 = arith.mulf %518, %61 : vector<1x128xf32>
    %520 = vector.broadcast %516 : f32 to vector<1x128xf32>
    %521 = arith.mulf %520, %60 : vector<1x128xf32>
    %522 = arith.addf %519, %521 : vector<1x128xf32>
    %523 = vector.broadcast %517 : f32 to vector<1x128xf32>
    %524 = arith.mulf %523, %57 : vector<1x128xf32>
    %525 = arith.addf %519, %524 : vector<1x128xf32>
    %526 = arith.addf %513, %522 : vector<1x128xf32>
    %527 = arith.addf %514, %525 : vector<1x128xf32>
    %c33 = arith.constant 33 : index
    %528 = memref.load %arg2[%c33] : memref<48xf32, #tpu.memory_space<smem>>
    %c33_162 = arith.constant 33 : index
    %529 = memref.load %arg3[%c33_162] : memref<48xf32, #tpu.memory_space<smem>>
    %c33_163 = arith.constant 33 : index
    %530 = memref.load %arg4[%c33_163] : memref<48xf32, #tpu.memory_space<smem>>
    %531 = vector.broadcast %528 : f32 to vector<1x128xf32>
    %532 = arith.mulf %531, %72 : vector<1x128xf32>
    %533 = vector.broadcast %529 : f32 to vector<1x128xf32>
    %534 = arith.mulf %533, %71 : vector<1x128xf32>
    %535 = arith.addf %532, %534 : vector<1x128xf32>
    %536 = vector.broadcast %530 : f32 to vector<1x128xf32>
    %537 = arith.mulf %536, %68 : vector<1x128xf32>
    %538 = arith.addf %532, %537 : vector<1x128xf32>
    %539 = arith.addf %526, %535 : vector<1x128xf32>
    %540 = arith.addf %527, %538 : vector<1x128xf32>
    %c34 = arith.constant 34 : index
    %541 = memref.load %arg2[%c34] : memref<48xf32, #tpu.memory_space<smem>>
    %c34_164 = arith.constant 34 : index
    %542 = memref.load %arg3[%c34_164] : memref<48xf32, #tpu.memory_space<smem>>
    %c34_165 = arith.constant 34 : index
    %543 = memref.load %arg4[%c34_165] : memref<48xf32, #tpu.memory_space<smem>>
    %544 = vector.broadcast %541 : f32 to vector<1x128xf32>
    %545 = arith.mulf %544, %73 : vector<1x128xf32>
    %546 = vector.broadcast %542 : f32 to vector<1x128xf32>
    %547 = arith.mulf %546, %65 : vector<1x128xf32>
    %548 = arith.addf %545, %547 : vector<1x128xf32>
    %549 = vector.broadcast %543 : f32 to vector<1x128xf32>
    %550 = arith.mulf %549, %63 : vector<1x128xf32>
    %551 = arith.addf %545, %550 : vector<1x128xf32>
    %552 = arith.addf %539, %548 : vector<1x128xf32>
    %553 = arith.addf %540, %551 : vector<1x128xf32>
    %c35 = arith.constant 35 : index
    %554 = memref.load %arg2[%c35] : memref<48xf32, #tpu.memory_space<smem>>
    %c35_166 = arith.constant 35 : index
    %555 = memref.load %arg3[%c35_166] : memref<48xf32, #tpu.memory_space<smem>>
    %c35_167 = arith.constant 35 : index
    %556 = memref.load %arg4[%c35_167] : memref<48xf32, #tpu.memory_space<smem>>
    %557 = vector.broadcast %554 : f32 to vector<1x128xf32>
    %558 = arith.mulf %557, %80 : vector<1x128xf32>
    %559 = vector.broadcast %555 : f32 to vector<1x128xf32>
    %560 = arith.mulf %559, %79 : vector<1x128xf32>
    %561 = arith.addf %558, %560 : vector<1x128xf32>
    %562 = vector.broadcast %556 : f32 to vector<1x128xf32>
    %563 = arith.mulf %562, %76 : vector<1x128xf32>
    %564 = arith.addf %558, %563 : vector<1x128xf32>
    %565 = arith.addf %552, %561 : vector<1x128xf32>
    %566 = arith.addf %553, %564 : vector<1x128xf32>
    %c2_168 = arith.constant 2 : index
    %567 = memref.load %arg5[%c2_168] : memref<4xf32, #tpu.memory_space<smem>>
    %568 = vector.broadcast %567 : f32 to vector<1x128xf32>
    %569 = arith.addf %565, %568 : vector<1x128xf32>
    %c0_169 = arith.constant 0 : index
    %c2_170 = arith.constant 2 : index
    %c0_171 = arith.constant 0 : index
    %c0_172 = arith.constant 0 : index
    %c0_173 = arith.constant 0 : index
    %570 = vector.load %arg9[%c0_169, %c2_170, %c0_171, %c0_172, %c0_173] : memref<1x4x2x1x128xf32, #tpu.memory_space<vmem>>, vector<1x1x1x1x128xf32>
    %571 = vector.shape_cast %570 : vector<1x1x1x1x128xf32> to vector<1x128xf32>
    %572 = vector.shape_cast %569 : vector<1x128xf32> to vector<1x1x1x1x128xf32>
    tpu.vector_store %arg9[%c0_169, %c2_170, %c0_171, %c0_172, %c0_173], %572 {strides = array<i32>} : memref<1x4x2x1x128xf32, #tpu.memory_space<vmem>>, vector<1x1x1x1x128xf32>,
    %c2_174 = arith.constant 2 : index
    %573 = memref.load %arg6[%c2_174] : memref<4xf32, #tpu.memory_space<smem>>
    %574 = vector.broadcast %573 : f32 to vector<1x128xf32>
    %575 = arith.addf %566, %574 : vector<1x128xf32>
    %c0_175 = arith.constant 0 : index
    %c2_176 = arith.constant 2 : index
    %c1_177 = arith.constant 1 : index
    %c0_178 = arith.constant 0 : index
    %c0_179 = arith.constant 0 : index
    %576 = vector.load %arg9[%c0_175, %c2_176, %c1_177, %c0_178, %c0_179] : memref<1x4x2x1x128xf32, #tpu.memory_space<vmem>>, vector<1x1x1x1x128xf32>
    %577 = vector.shape_cast %576 : vector<1x1x1x1x128xf32> to vector<1x128xf32>
    %578 = vector.shape_cast %575 : vector<1x128xf32> to vector<1x1x1x1x128xf32>
    tpu.vector_store %arg9[%c0_175, %c2_176, %c1_177, %c0_178, %c0_179], %578 {strides = array<i32>} : memref<1x4x2x1x128xf32, #tpu.memory_space<vmem>>, vector<1x1x1x1x128xf32>,
    %c36 = arith.constant 36 : index
    %579 = memref.load %arg2[%c36] : memref<48xf32, #tpu.memory_space<smem>>
    %c36_180 = arith.constant 36 : index
    %580 = memref.load %arg3[%c36_180] : memref<48xf32, #tpu.memory_space<smem>>
    %c36_181 = arith.constant 36 : index
    %581 = memref.load %arg4[%c36_181] : memref<48xf32, #tpu.memory_space<smem>>
    %582 = vector.broadcast %579 : f32 to vector<1x128xf32>
    %583 = arith.mulf %582, %15 : vector<1x128xf32>
    %584 = vector.broadcast %580 : f32 to vector<1x128xf32>
    %585 = arith.mulf %584, %14 : vector<1x128xf32>
    %586 = arith.addf %583, %585 : vector<1x128xf32>
    %587 = vector.broadcast %581 : f32 to vector<1x128xf32>
    %588 = arith.mulf %587, %11 : vector<1x128xf32>
    %589 = arith.addf %583, %588 : vector<1x128xf32>
    %c37 = arith.constant 37 : index
    %590 = memref.load %arg2[%c37] : memref<48xf32, #tpu.memory_space<smem>>
    %c37_182 = arith.constant 37 : index
    %591 = memref.load %arg3[%c37_182] : memref<48xf32, #tpu.memory_space<smem>>
    %c37_183 = arith.constant 37 : index
    %592 = memref.load %arg4[%c37_183] : memref<48xf32, #tpu.memory_space<smem>>
    %593 = vector.broadcast %590 : f32 to vector<1x128xf32>
    %594 = arith.mulf %593, %16 : vector<1x128xf32>
    %595 = vector.broadcast %591 : f32 to vector<1x128xf32>
    %596 = arith.mulf %595, %8 : vector<1x128xf32>
    %597 = arith.addf %594, %596 : vector<1x128xf32>
    %598 = vector.broadcast %592 : f32 to vector<1x128xf32>
    %599 = arith.mulf %598, %6 : vector<1x128xf32>
    %600 = arith.addf %594, %599 : vector<1x128xf32>
    %601 = arith.addf %586, %597 : vector<1x128xf32>
    %602 = arith.addf %589, %600 : vector<1x128xf32>
    %c38 = arith.constant 38 : index
    %603 = memref.load %arg2[%c38] : memref<48xf32, #tpu.memory_space<smem>>
    %c38_184 = arith.constant 38 : index
    %604 = memref.load %arg3[%c38_184] : memref<48xf32, #tpu.memory_space<smem>>
    %c38_185 = arith.constant 38 : index
    %605 = memref.load %arg4[%c38_185] : memref<48xf32, #tpu.memory_space<smem>>
    %606 = vector.broadcast %603 : f32 to vector<1x128xf32>
    %607 = arith.mulf %606, %23 : vector<1x128xf32>
    %608 = vector.broadcast %604 : f32 to vector<1x128xf32>
    %609 = arith.mulf %608, %22 : vector<1x128xf32>
    %610 = arith.addf %607, %609 : vector<1x128xf32>
    %611 = vector.broadcast %605 : f32 to vector<1x128xf32>
    %612 = arith.mulf %611, %19 : vector<1x128xf32>
    %613 = arith.addf %607, %612 : vector<1x128xf32>
    %614 = arith.addf %601, %610 : vector<1x128xf32>
    %615 = arith.addf %602, %613 : vector<1x128xf32>
    %c39 = arith.constant 39 : index
    %616 = memref.load %arg2[%c39] : memref<48xf32, #tpu.memory_space<smem>>
    %c39_186 = arith.constant 39 : index
    %617 = memref.load %arg3[%c39_186] : memref<48xf32, #tpu.memory_space<smem>>
    %c39_187 = arith.constant 39 : index
    %618 = memref.load %arg4[%c39_187] : memref<48xf32, #tpu.memory_space<smem>>
    %619 = vector.broadcast %616 : f32 to vector<1x128xf32>
    %620 = arith.mulf %619, %34 : vector<1x128xf32>
    %621 = vector.broadcast %617 : f32 to vector<1x128xf32>
    %622 = arith.mulf %621, %33 : vector<1x128xf32>
    %623 = arith.addf %620, %622 : vector<1x128xf32>
    %624 = vector.broadcast %618 : f32 to vector<1x128xf32>
    %625 = arith.mulf %624, %30 : vector<1x128xf32>
    %626 = arith.addf %620, %625 : vector<1x128xf32>
    %627 = arith.addf %614, %623 : vector<1x128xf32>
    %628 = arith.addf %615, %626 : vector<1x128xf32>
    %c40 = arith.constant 40 : index
    %629 = memref.load %arg2[%c40] : memref<48xf32, #tpu.memory_space<smem>>
    %c40_188 = arith.constant 40 : index
    %630 = memref.load %arg3[%c40_188] : memref<48xf32, #tpu.memory_space<smem>>
    %c40_189 = arith.constant 40 : index
    %631 = memref.load %arg4[%c40_189] : memref<48xf32, #tpu.memory_space<smem>>
    %632 = vector.broadcast %629 : f32 to vector<1x128xf32>
    %633 = arith.mulf %632, %35 : vector<1x128xf32>
    %634 = vector.broadcast %630 : f32 to vector<1x128xf32>
    %635 = arith.mulf %634, %27 : vector<1x128xf32>
    %636 = arith.addf %633, %635 : vector<1x128xf32>
    %637 = vector.broadcast %631 : f32 to vector<1x128xf32>
    %638 = arith.mulf %637, %25 : vector<1x128xf32>
    %639 = arith.addf %633, %638 : vector<1x128xf32>
    %640 = arith.addf %627, %636 : vector<1x128xf32>
    %641 = arith.addf %628, %639 : vector<1x128xf32>
    %c41 = arith.constant 41 : index
    %642 = memref.load %arg2[%c41] : memref<48xf32, #tpu.memory_space<smem>>
    %c41_190 = arith.constant 41 : index
    %643 = memref.load %arg3[%c41_190] : memref<48xf32, #tpu.memory_space<smem>>
    %c41_191 = arith.constant 41 : index
    %644 = memref.load %arg4[%c41_191] : memref<48xf32, #tpu.memory_space<smem>>
    %645 = vector.broadcast %642 : f32 to vector<1x128xf32>
    %646 = arith.mulf %645, %42 : vector<1x128xf32>
    %647 = vector.broadcast %643 : f32 to vector<1x128xf32>
    %648 = arith.mulf %647, %41 : vector<1x128xf32>
    %649 = arith.addf %646, %648 : vector<1x128xf32>
    %650 = vector.broadcast %644 : f32 to vector<1x128xf32>
    %651 = arith.mulf %650, %38 : vector<1x128xf32>
    %652 = arith.addf %646, %651 : vector<1x128xf32>
    %653 = arith.addf %640, %649 : vector<1x128xf32>
    %654 = arith.addf %641, %652 : vector<1x128xf32>
    %c42 = arith.constant 42 : index
    %655 = memref.load %arg2[%c42] : memref<48xf32, #tpu.memory_space<smem>>
    %c42_192 = arith.constant 42 : index
    %656 = memref.load %arg3[%c42_192] : memref<48xf32, #tpu.memory_space<smem>>
    %c42_193 = arith.constant 42 : index
    %657 = memref.load %arg4[%c42_193] : memref<48xf32, #tpu.memory_space<smem>>
    %658 = vector.broadcast %655 : f32 to vector<1x128xf32>
    %659 = arith.mulf %658, %53 : vector<1x128xf32>
    %660 = vector.broadcast %656 : f32 to vector<1x128xf32>
    %661 = arith.mulf %660, %52 : vector<1x128xf32>
    %662 = arith.addf %659, %661 : vector<1x128xf32>
    %663 = vector.broadcast %657 : f32 to vector<1x128xf32>
    %664 = arith.mulf %663, %49 : vector<1x128xf32>
    %665 = arith.addf %659, %664 : vector<1x128xf32>
    %666 = arith.addf %653, %662 : vector<1x128xf32>
    %667 = arith.addf %654, %665 : vector<1x128xf32>
    %c43 = arith.constant 43 : index
    %668 = memref.load %arg2[%c43] : memref<48xf32, #tpu.memory_space<smem>>
    %c43_194 = arith.constant 43 : index
    %669 = memref.load %arg3[%c43_194] : memref<48xf32, #tpu.memory_space<smem>>
    %c43_195 = arith.constant 43 : index
    %670 = memref.load %arg4[%c43_195] : memref<48xf32, #tpu.memory_space<smem>>
    %671 = vector.broadcast %668 : f32 to vector<1x128xf32>
    %672 = arith.mulf %671, %54 : vector<1x128xf32>
    %673 = vector.broadcast %669 : f32 to vector<1x128xf32>
    %674 = arith.mulf %673, %46 : vector<1x128xf32>
    %675 = arith.addf %672, %674 : vector<1x128xf32>
    %676 = vector.broadcast %670 : f32 to vector<1x128xf32>
    %677 = arith.mulf %676, %44 : vector<1x128xf32>
    %678 = arith.addf %672, %677 : vector<1x128xf32>
    %679 = arith.addf %666, %675 : vector<1x128xf32>
    %680 = arith.addf %667, %678 : vector<1x128xf32>
    %c44 = arith.constant 44 : index
    %681 = memref.load %arg2[%c44] : memref<48xf32, #tpu.memory_space<smem>>
    %c44_196 = arith.constant 44 : index
    %682 = memref.load %arg3[%c44_196] : memref<48xf32, #tpu.memory_space<smem>>
    %c44_197 = arith.constant 44 : index
    %683 = memref.load %arg4[%c44_197] : memref<48xf32, #tpu.memory_space<smem>>
    %684 = vector.broadcast %681 : f32 to vector<1x128xf32>
    %685 = arith.mulf %684, %61 : vector<1x128xf32>
    %686 = vector.broadcast %682 : f32 to vector<1x128xf32>
    %687 = arith.mulf %686, %60 : vector<1x128xf32>
    %688 = arith.addf %685, %687 : vector<1x128xf32>
    %689 = vector.broadcast %683 : f32 to vector<1x128xf32>
    %690 = arith.mulf %689, %57 : vector<1x128xf32>
    %691 = arith.addf %685, %690 : vector<1x128xf32>
    %692 = arith.addf %679, %688 : vector<1x128xf32>
    %693 = arith.addf %680, %691 : vector<1x128xf32>
    %c45 = arith.constant 45 : index
    %694 = memref.load %arg2[%c45] : memref<48xf32, #tpu.memory_space<smem>>
    %c45_198 = arith.constant 45 : index
    %695 = memref.load %arg3[%c45_198] : memref<48xf32, #tpu.memory_space<smem>>
    %c45_199 = arith.constant 45 : index
    %696 = memref.load %arg4[%c45_199] : memref<48xf32, #tpu.memory_space<smem>>
    %697 = vector.broadcast %694 : f32 to vector<1x128xf32>
    %698 = arith.mulf %697, %72 : vector<1x128xf32>
    %699 = vector.broadcast %695 : f32 to vector<1x128xf32>
    %700 = arith.mulf %699, %71 : vector<1x128xf32>
    %701 = arith.addf %698, %700 : vector<1x128xf32>
    %702 = vector.broadcast %696 : f32 to vector<1x128xf32>
    %703 = arith.mulf %702, %68 : vector<1x128xf32>
    %704 = arith.addf %698, %703 : vector<1x128xf32>
    %705 = arith.addf %692, %701 : vector<1x128xf32>
    %706 = arith.addf %693, %704 : vector<1x128xf32>
    %c46 = arith.constant 46 : index
    %707 = memref.load %arg2[%c46] : memref<48xf32, #tpu.memory_space<smem>>
    %c46_200 = arith.constant 46 : index
    %708 = memref.load %arg3[%c46_200] : memref<48xf32, #tpu.memory_space<smem>>
    %c46_201 = arith.constant 46 : index
    %709 = memref.load %arg4[%c46_201] : memref<48xf32, #tpu.memory_space<smem>>
    %710 = vector.broadcast %707 : f32 to vector<1x128xf32>
    %711 = arith.mulf %710, %73 : vector<1x128xf32>
    %712 = vector.broadcast %708 : f32 to vector<1x128xf32>
    %713 = arith.mulf %712, %65 : vector<1x128xf32>
    %714 = arith.addf %711, %713 : vector<1x128xf32>
    %715 = vector.broadcast %709 : f32 to vector<1x128xf32>
    %716 = arith.mulf %715, %63 : vector<1x128xf32>
    %717 = arith.addf %711, %716 : vector<1x128xf32>
    %718 = arith.addf %705, %714 : vector<1x128xf32>
    %719 = arith.addf %706, %717 : vector<1x128xf32>
    %c47 = arith.constant 47 : index
    %720 = memref.load %arg2[%c47] : memref<48xf32, #tpu.memory_space<smem>>
    %c47_202 = arith.constant 47 : index
    %721 = memref.load %arg3[%c47_202] : memref<48xf32, #tpu.memory_space<smem>>
    %c47_203 = arith.constant 47 : index
    %722 = memref.load %arg4[%c47_203] : memref<48xf32, #tpu.memory_space<smem>>
    %723 = vector.broadcast %720 : f32 to vector<1x128xf32>
    %724 = arith.mulf %723, %80 : vector<1x128xf32>
    %725 = vector.broadcast %721 : f32 to vector<1x128xf32>
    %726 = arith.mulf %725, %79 : vector<1x128xf32>
    %727 = arith.addf %724, %726 : vector<1x128xf32>
    %728 = vector.broadcast %722 : f32 to vector<1x128xf32>
    %729 = arith.mulf %728, %76 : vector<1x128xf32>
    %730 = arith.addf %724, %729 : vector<1x128xf32>
    %731 = arith.addf %718, %727 : vector<1x128xf32>
    %732 = arith.addf %719, %730 : vector<1x128xf32>
    %c3_204 = arith.constant 3 : index
    %733 = memref.load %arg5[%c3_204] : memref<4xf32, #tpu.memory_space<smem>>
    %734 = vector.broadcast %733 : f32 to vector<1x128xf32>
    %735 = arith.addf %731, %734 : vector<1x128xf32>
    %c0_205 = arith.constant 0 : index
    %c3_206 = arith.constant 3 : index
    %c0_207 = arith.constant 0 : index
    %c0_208 = arith.constant 0 : index
    %c0_209 = arith.constant 0 : index
    %736 = vector.load %arg9[%c0_205, %c3_206, %c0_207, %c0_208, %c0_209] : memref<1x4x2x1x128xf32, #tpu.memory_space<vmem>>, vector<1x1x1x1x128xf32>
    %737 = vector.shape_cast %736 : vector<1x1x1x1x128xf32> to vector<1x128xf32>
    %738 = vector.shape_cast %735 : vector<1x128xf32> to vector<1x1x1x1x128xf32>
    tpu.vector_store %arg9[%c0_205, %c3_206, %c0_207, %c0_208, %c0_209], %738 {strides = array<i32>} : memref<1x4x2x1x128xf32, #tpu.memory_space<vmem>>, vector<1x1x1x1x128xf32>,
    %c3_210 = arith.constant 3 : index
    %739 = memref.load %arg6[%c3_210] : memref<4xf32, #tpu.memory_space<smem>>
    %740 = vector.broadcast %739 : f32 to vector<1x128xf32>
    %741 = arith.addf %732, %740 : vector<1x128xf32>
    %c0_211 = arith.constant 0 : index
    %c3_212 = arith.constant 3 : index
    %c1_213 = arith.constant 1 : index
    %c0_214 = arith.constant 0 : index
    %c0_215 = arith.constant 0 : index
    %742 = vector.load %arg9[%c0_211, %c3_212, %c1_213, %c0_214, %c0_215] : memref<1x4x2x1x128xf32, #tpu.memory_space<vmem>>, vector<1x1x1x1x128xf32>
    %743 = vector.shape_cast %742 : vector<1x1x1x1x128xf32> to vector<1x128xf32>
    %744 = vector.shape_cast %741 : vector<1x128xf32> to vector<1x1x1x1x128xf32>
    tpu.vector_store %arg9[%c0_211, %c3_212, %c1_213, %c0_214, %c0_215], %744 {strides = array<i32>} : memref<1x4x2x1x128xf32, #tpu.memory_space<vmem>>, vector<1x1x1x1x128xf32>,
    return
  }
  func.func @transform_0(%arg0: i32, %arg1: i32) -> i32 {
    %c0_i32 = arith.constant 0 : i32
    %c0_i32_0 = arith.constant 0 : i32
    return %c0_i32 : i32
  }
  func.func @transform_1(%arg0: i32, %arg1: i32) -> i32 {
    %c0_i32 = arith.constant 0 : i32
    %c0_i32_0 = arith.constant 0 : i32
    return %c0_i32 : i32
  }
  func.func @transform_2(%arg0: i32, %arg1: i32) -> i32 {
    %c0_i32 = arith.constant 0 : i32
    %c0_i32_0 = arith.constant 0 : i32
    return %c0_i32 : i32
  }
  func.func @transform_3(%arg0: i32, %arg1: i32) -> i32 {
    %c0_i32 = arith.constant 0 : i32
    %c0_i32_0 = arith.constant 0 : i32
    return %c0_i32 : i32
  }
  func.func @transform_4(%arg0: i32, %arg1: i32) -> i32 {
    %c0_i32 = arith.constant 0 : i32
    %c0_i32_0 = arith.constant 0 : i32
    return %c0_i32 : i32
  }
  func.func @transform_5(%arg0: i32, %arg1: i32) -> (i32, i32) {
    %c0_i32 = arith.constant 0 : i32
    %c0_i32_0 = arith.constant 0 : i32
    %c0_i32_1 = arith.constant 0 : i32
    return %c0_i32, %c0_i32_0 : i32, i32
  }
  func.func @transform_6(%arg0: i32, %arg1: i32) -> (i32, i32, i32, i32, i32) {
    %c0_i32 = arith.constant 0 : i32
    %c0_i32_0 = arith.constant 0 : i32
    %c0_i32_1 = arith.constant 0 : i32
    %c0_i32_2 = arith.constant 0 : i32
    return %arg0, %c0_i32, %c0_i32_0, %arg1, %c0_i32_1 : i32, i32, i32, i32, i32
  }
  func.func @transform_7(%arg0: i32, %arg1: i32) -> (i32, i32, i32, i32, i32) {
    %c0_i32 = arith.constant 0 : i32
    %c0_i32_0 = arith.constant 0 : i32
    %c0_i32_1 = arith.constant 0 : i32
    %c0_i32_2 = arith.constant 0 : i32
    return %arg0, %c0_i32, %c0_i32_0, %arg1, %c0_i32_1 : i32, i32, i32, i32, i32
  }
}

</mosaic_0001>

<llo_original>
// kernel: complex_conv.1
$region0: #{complex_conv.1}
  #allocation0 [shape = 'u32[]', space=smem, size = 0x4, offset = 0x4, fixed_abs, tag = 'smem constant byte address 0x4 - core index']
  #allocation1 [shape = 'u32[72,128]{1,0:T(1,128)}', space=vmem, size = 0x9000, scoped, tag = 'internal scratch']
  %s0 = inlined_call_operand.vmem [shape: f32[48], index: 0, kind: input, shape index: {}]
  %s1 = inlined_call_operand.vmem [shape: f32[48], index: 1, kind: input, shape index: {}]
  %s2 = inlined_call_operand.vmem [shape: f32[48], index: 2, kind: input, shape index: {}]
  %s3 = inlined_call_operand.vmem [shape: f32[4], index: 3, kind: input, shape index: {}]
  %s4 = inlined_call_operand.vmem [shape: f32[4], index: 4, kind: input, shape index: {}]
  %s5 = inlined_call_operand.vmem [shape: s32[1,128], index: 5, kind: input, shape index: {}]
  %s6 = inlined_call_operand.vmem [shape: f32[2,4,2,1,128], index: 6, kind: input, shape index: {}]
  %s7 = inlined_call_operand.vmem [shape: f32[2,4,2,1,128], index: 7, kind: output, shape index: {}]
  %s8 = sld [smem:[#allocation0]]
  $region81: #{complex_conv.1} parent=0
    _
  %s10 = ssub.s32 1, %s8
  %s11 = scalar_select 0, %s10, %s8
  $region1: #{complex_conv.1} parent=0
    #allocation2 [shape = 'u8[512]{0}', space=smem, size = 0x200, scoped, tag = 'input window, operand 0, single buffered']
    #allocation3 [shape = 's32[2]{0}', space=sflag, size = 0x8, scoped, tag = 'scoped memory for complex_conv.1']
    #allocation4 [shape = 'u8[512]{0}', space=smem, size = 0x200, scoped, tag = 'input window, operand 1, single buffered']
    #allocation5 [shape = 's32[1]{0}', space=sflag, size = 0x4, scoped, tag = 'scoped memory for complex_conv.1']
    #allocation6 [shape = 'u8[512]{0}', space=smem, size = 0x200, scoped, tag = 'input window, operand 2, single buffered']
    #allocation7 [shape = 'u8[512]{0}', space=smem, size = 0x200, scoped, tag = 'input window, operand 3, single buffered']
    #allocation8 [shape = 's32[1]{0}', space=sflag, size = 0x4, scoped, tag = 'scoped memory for complex_conv.1']
    #allocation9 [shape = 'u8[512]{0}', space=smem, size = 0x200, scoped, tag = 'input window, operand 4, single buffered']
    %12 = vsyncpa [#allocation3], 0
    %13 = vsyncpa [#allocation5], 0
    %14 = vsyncpa [#allocation8], 0
    loop: start=0, step=1, limit=4
    $region2: #{complex_conv.1} parent=1 // loop_pre_header
      _
    $region3: #{complex_conv.1} parent=1 // loop_header
      %s16 = sphi 0, %s20
      %p17 = scmp.ge.s32.totalorder %s16, 4
      %s23 = sphi 0, %s35
      %s24 = sphi 0, %s31
      %s25 = sphi 0, %s23
      %s26 = sphi 0, %s24
      %s27 = sphi 0, %s25
      %s28 = sphi 0, %s26
      %s36 = sphi 0, %s36
      %s38 = sphi 0, %s36
      %s39 = sphi 0, %s38
      %s53 = sphi 0, %s39
      %s57 = sphi 0, %s57
      %s59 = sphi 0, %s57
      %s60 = sphi 0, %s59
      %s74 = sphi 0, %s60
      %s78 = sphi 0, %s78
      %s80 = sphi 0, %s78
      %s81 = sphi 0, %s80
      %s95 = sphi 0, %s81
      %s99 = sphi 0, %s99
      %s101 = sphi 0, %s99
      %s102 = sphi 0, %s101
      %s116 = sphi 0, %s102
      %s120 = sphi 0, %s120
      %s122 = sphi 0, %s120
      %s123 = sphi 0, %s122
      %s137 = sphi 0, %s123
      %s141 = sphi 0, %s141
      %s143 = sphi 0, %s141
      %s144 = sphi 0, %s143
      %s158 = sphi 0, %s144
      %s166 = sphi 0, %s168
      %s169 = sphi 0, %s166
      %s170 = sphi 0, %s169
      %s186 = sphi 0, %s170
      %s194 = sphi 0, %s196
      %s197 = sphi 0, %s194
      %s198 = sphi 0, %s197
      %s214 = sphi 0, %s198
    $region4: #{complex_conv.1} parent=1 // loop_header_branch
      %19 = sbr.rel (%p17) target = $region8
    $region5: #{complex_conv.1} parent=1 // loop_body
      %s21 = ssub.s32 %s16, 1
      %s22 = ssub.s32 %s16, 2
      %s29 = sadd.s32 1, %s24
      %p30 = scmp.ge.s32.totalorder %s29, 1
      %s31 = scalar_select %p30, 0, %s29
      %s32 = sadd.s32 1, %s23
      %s33 = scalar_select %p30, %s32, %s23
      %p34 = scmp.ge.s32.totalorder %s33, 2
      %s35 = scalar_select %p34, 0, %s33
      %s37 = sadd.s32 %s36, 1
      %p40 = scmp.eq.s32.totalorder %s16, 1
      %p41 = scmp.ne.s32.totalorder %s36, %s38
      %p42 = scmp.eq.s32.totalorder %s16, 0
      %p43 = por %p41, %p42
      %p44 = scmp.ne.s32.totalorder %s36, %s38
      %p45 = scmp.eq.s32.totalorder %s21, 1
      %p46 = por %p44, %p45
      %p47 = scmp.ne.s32.totalorder %s38, %s39
      %p48 = scmp.eq.s32.totalorder %s21, 0
      %p49 = por %p47, %p48
      %p50 = scmp.ne.s32.totalorder %s38, %s39
      %p51 = scmp.eq.s32.totalorder %s22, 1
      %p52 = por %p50, %p51
      %p54 = scmp.ne.s32.totalorder %s39, %s53
      %p55 = scmp.eq.s32.totalorder %s22, 0
      %p56 = por %p54, %p55
      %s58 = sadd.s32 %s57, 1
      %p61 = scmp.eq.s32.totalorder %s16, 1
      %p62 = scmp.ne.s32.totalorder %s57, %s59
      %p63 = scmp.eq.s32.totalorder %s16, 0
      %p64 = por %p62, %p63
      %p65 = scmp.ne.s32.totalorder %s57, %s59
      %p66 = scmp.eq.s32.totalorder %s21, 1
      %p67 = por %p65, %p66
      %p68 = scmp.ne.s32.totalorder %s59, %s60
      %p69 = scmp.eq.s32.totalorder %s21, 0
      %p70 = por %p68, %p69
      %p71 = scmp.ne.s32.totalorder %s59, %s60
      %p72 = scmp.eq.s32.totalorder %s22, 1
      %p73 = por %p71, %p72
      %p75 = scmp.ne.s32.totalorder %s60, %s74
      %p76 = scmp.eq.s32.totalorder %s22, 0
      %p77 = por %p75, %p76
      %s79 = sadd.s32 %s78, 1
      %p82 = scmp.eq.s32.totalorder %s16, 1
      %p83 = scmp.ne.s32.totalorder %s78, %s80
      %p84 = scmp.eq.s32.totalorder %s16, 0
      %p85 = por %p83, %p84
      %p86 = scmp.ne.s32.totalorder %s78, %s80
      %p87 = scmp.eq.s32.totalorder %s21, 1
      %p88 = por %p86, %p87
      %p89 = scmp.ne.s32.totalorder %s80, %s81
      %p90 = scmp.eq.s32.totalorder %s21, 0
      %p91 = por %p89, %p90
      %p92 = scmp.ne.s32.totalorder %s80, %s81
      %p93 = scmp.eq.s32.totalorder %s22, 1
      %p94 = por %p92, %p93
      %p96 = scmp.ne.s32.totalorder %s81, %s95
      %p97 = scmp.eq.s32.totalorder %s22, 0
      %p98 = por %p96, %p97
      %s100 = sadd.s32 %s99, 1
      %p103 = scmp.eq.s32.totalorder %s16, 1
      %p104 = scmp.ne.s32.totalorder %s99, %s101
      %p105 = scmp.eq.s32.totalorder %s16, 0
      %p106 = por %p104, %p105
      %p107 = scmp.ne.s32.totalorder %s99, %s101
      %p108 = scmp.eq.s32.totalorder %s21, 1
      %p109 = por %p107, %p108
      %p110 = scmp.ne.s32.totalorder %s101, %s102
      %p111 = scmp.eq.s32.totalorder %s21, 0
      %p112 = por %p110, %p111
      %p113 = scmp.ne.s32.totalorder %s101, %s102
      %p114 = scmp.eq.s32.totalorder %s22, 1
      %p115 = por %p113, %p114
      %p117 = scmp.ne.s32.totalorder %s102, %s116
      %p118 = scmp.eq.s32.totalorder %s22, 0
      %p119 = por %p117, %p118
      %s121 = sadd.s32 %s120, 1
      %p124 = scmp.eq.s32.totalorder %s16, 1
      %p125 = scmp.ne.s32.totalorder %s120, %s122
      %p126 = scmp.eq.s32.totalorder %s16, 0
      %p127 = por %p125, %p126
      %p128 = scmp.ne.s32.totalorder %s120, %s122
      %p129 = scmp.eq.s32.totalorder %s21, 1
      %p130 = por %p128, %p129
      %p131 = scmp.ne.s32.totalorder %s122, %s123
      %p132 = scmp.eq.s32.totalorder %s21, 0
      %p133 = por %p131, %p132
      %p134 = scmp.ne.s32.totalorder %s122, %s123
      %p135 = scmp.eq.s32.totalorder %s22, 1
      %p136 = por %p134, %p135
      %p138 = scmp.ne.s32.totalorder %s123, %s137
      %p139 = scmp.eq.s32.totalorder %s22, 0
      %p140 = por %p138, %p139
      %s142 = sadd.s32 %s141, 1
      %p145 = scmp.eq.s32.totalorder %s16, 1
      %p146 = scmp.ne.s32.totalorder %s141, %s143
      %p147 = scmp.eq.s32.totalorder %s16, 0
      %p148 = por %p146, %p147
      %p149 = scmp.ne.s32.totalorder %s141, %s143
      %p150 = scmp.eq.s32.totalorder %s21, 1
      %p151 = por %p149, %p150
      %p152 = scmp.ne.s32.totalorder %s143, %s144
      %p153 = scmp.eq.s32.totalorder %s21, 0
      %p154 = por %p152, %p153
      %p155 = scmp.ne.s32.totalorder %s143, %s144
      %p156 = scmp.eq.s32.totalorder %s22, 1
      %p157 = por %p155, %p156
      %p159 = scmp.ne.s32.totalorder %s144, %s158
      %p160 = scmp.eq.s32.totalorder %s22, 0
      %p161 = por %p159, %p160
      %s162 = ssub.s32 %s23, %s35
      %s163 = ssub.s32 %s24, %s31
      %s164 = sor.u32 %s162, %s163
      %p165 = scmp.eq.s32.totalorder %s164, 0
      %s167 = sadd.s32 %s166, 1
      %s168 = scalar_select %p165, %s166, %s167
      %p171 = pneg %p165
      %p172 = scmp.eq.s32.totalorder %s16, 1
      %p173 = por %p171, %p172
      %p174 = scmp.ne.s32.totalorder %s166, %s169
      %p175 = scmp.eq.s32.totalorder %s16, 0
      %p176 = por %p174, %p175
      %p177 = scmp.ne.s32.totalorder %s166, %s169
      %p178 = scmp.eq.s32.totalorder %s21, 1
      %p179 = por %p177, %p178
      %p180 = scmp.ne.s32.totalorder %s169, %s170
      %p181 = scmp.eq.s32.totalorder %s21, 0
      %p182 = por %p180, %p181
      %p183 = scmp.ne.s32.totalorder %s169, %s170
      %p184 = scmp.eq.s32.totalorder %s22, 1
      %p185 = por %p183, %p184
      %p187 = scmp.ne.s32.totalorder %s170, %s186
      %p188 = scmp.eq.s32.totalorder %s22, 0
      %p189 = por %p187, %p188
      %s190 = ssub.s32 %s23, %s35
      %s191 = ssub.s32 %s24, %s31
      %s192 = sor.u32 %s190, %s191
      %p193 = scmp.eq.s32.totalorder %s192, 0
      %s195 = sadd.s32 %s194, 1
      %s196 = scalar_select %p193, %s194, %s195
      %p199 = pneg %p193
      %p200 = scmp.eq.s32.totalorder %s16, 1
      %p201 = por %p199, %p200
      %p202 = scmp.ne.s32.totalorder %s194, %s197
      %p203 = scmp.eq.s32.totalorder %s16, 0
      %p204 = por %p202, %p203
      %p205 = scmp.ne.s32.totalorder %s194, %s197
      %p206 = scmp.eq.s32.totalorder %s21, 1
      %p207 = por %p205, %p206
      %p208 = scmp.ne.s32.totalorder %s197, %s198
      %p209 = scmp.eq.s32.totalorder %s21, 0
      %p210 = por %p208, %p209
      %p211 = scmp.ne.s32.totalorder %s197, %s198
      %p212 = scmp.eq.s32.totalorder %s22, 1
      %p213 = por %p211, %p212
      %p215 = scmp.ne.s32.totalorder %s198, %s214
      %p216 = scmp.eq.s32.totalorder %s22, 0
      %p217 = por %p215, %p216
      %p218 = scmp.le.s32.totalorder 1, %s16
      %p219 = scmp.lt.s32.totalorder %s16, 3
      %p220 = pnand %p218, %p219
      %p221 = pneg %p220
      // Predicated region
      $region9: #{complex_conv.1} parent=5 // pred_check
        _
      $region10: #{complex_conv.1} parent=5 // pred_check_branch
        %223 = sbr.rel (%p220) target = $region12
      $region11: #{complex_conv.1} parent=5 // pred_region
        %s224 = ssub.s32 %s16, 1
        // Predicated region
        $region13: #{complex_conv.1} parent=11 // pred_check
          %p225 = pneg %p49
        $region14: #{complex_conv.1} parent=11 // pred_check_branch
          %227 = sbr.rel (%p225) target = $region16
        $region15: #{complex_conv.1} parent=11 // pred_region
          %229 = vsyncadd [#allocation3], 0
          %s231 = sshll.u32 %s0, 4
          %s232 = int_to_ptr.vmem [resolvable:$true] %s231
          %234 = dma.vmem_to_smem %s232, 16, [#allocation2], [#allocation3]
        $region16: #{complex_conv.1} parent=11 // pred_fallthru
          _
        // Predicated region
        $region17: #{complex_conv.1} parent=11 // pred_check
          %p235 = pneg %p70
        $region18: #{complex_conv.1} parent=11 // pred_check_branch
          %237 = sbr.rel (%p235) target = $region20
        $region19: #{complex_conv.1} parent=11 // pred_region
          %239 = vsyncadd [#allocation5], 0
          %s241 = sshll.u32 %s1, 4
          %s242 = int_to_ptr.vmem [resolvable:$true] %s241
          %244 = dma.vmem_to_smem %s242, 16, [#allocation4], [#allocation5]
        $region20: #{complex_conv.1} parent=11 // pred_fallthru
          _
        // Predicated region
        $region21: #{complex_conv.1} parent=11 // pred_check
          %p245 = pneg %p91
        $region22: #{complex_conv.1} parent=11 // pred_check_branch
          %247 = sbr.rel (%p245) target = $region24
        $region23: #{complex_conv.1} parent=11 // pred_region
          %249 = vsyncadd [#allocation5], 0
          %s251 = sshll.u32 %s2, 4
          %s252 = int_to_ptr.vmem [resolvable:$true] %s251
          %254 = dma.vmem_to_smem %s252, 16, [#allocation6], [#allocation5]
        $region24: #{complex_conv.1} parent=11 // pred_fallthru
          _
        // Predicated region
        $region25: #{complex_conv.1} parent=11 // pred_check
          %p255 = pneg %p112
        $region26: #{complex_conv.1} parent=11 // pred_check_branch
          %257 = sbr.rel (%p255) target = $region28
        $region27: #{complex_conv.1} parent=11 // pred_region
          %259 = vsyncadd [#allocation8], 0
          %s261 = sshll.u32 %s3, 4
          %s262 = int_to_ptr.vmem [resolvable:$true] %s261
          %264 = dma.vmem_to_smem %s262, 16, [#allocation7], [#allocation8]
        $region28: #{complex_conv.1} parent=11 // pred_fallthru
          _
        // Predicated region
        $region29: #{complex_conv.1} parent=11 // pred_check
          %p265 = pneg %p133
        $region30: #{complex_conv.1} parent=11 // pred_check_branch
          %267 = sbr.rel (%p265) target = $region32
        $region31: #{complex_conv.1} parent=11 // pred_region
          %269 = vsyncadd [#allocation8], 0
          %s271 = sshll.u32 %s4, 4
          %s272 = int_to_ptr.vmem [resolvable:$true] %s271
          %274 = dma.vmem_to_smem %s272, 16, [#allocation9], [#allocation8]
        $region32: #{complex_conv.1} parent=11 // pred_fallthru
          _
        // Predicated region
        $region33: #{complex_conv.1} parent=11 // pred_check
          %p275 = pneg %p154
        $region34: #{complex_conv.1} parent=11 // pred_check_branch
          %277 = sbr.rel (%p275) target = $region36
        $region35: #{complex_conv.1} parent=11 // pred_region
          _
        $region36: #{complex_conv.1} parent=11 // pred_fallthru
          _
      $region12: #{complex_conv.1} parent=5 // pred_fallthru
        _
      %p278 = scmp.lt.s32.totalorder %s16, 2
      // Predicated region
      $region37: #{complex_conv.1} parent=5 // pred_check
        %p279 = pneg %p278
      $region38: #{complex_conv.1} parent=5 // pred_check_branch
        %281 = sbr.rel (%p279) target = $region40
      $region39: #{complex_conv.1} parent=5 // pred_region
        // Predicated region
        $region41: #{complex_conv.1} parent=39 // pred_check
          %p282 = pneg %p176
        $region42: #{complex_conv.1} parent=39 // pred_check_branch
          %284 = sbr.rel (%p282) target = $region44
        $region43: #{complex_conv.1} parent=39 // pred_region
          %p285 = scmp.lt.s32.totalorder %s23, 1
          %s286 = scalar_select %p285, %s23, 1
          %p287 = scmp.lt.s32.totalorder %s24, 0
          %s288 = scalar_select %p287, %s24, 0
          %s289 = smul.addr %s286, 8
          %s290 = sadd.s32 %s288, %s289
          %s291 = scalar_lea.vmem %s6, %s290
        $region44: #{complex_conv.1} parent=39 // pred_fallthru
          _
      $region40: #{complex_conv.1} parent=5 // pred_fallthru
        _
      %p292 = scmp.le.s32.totalorder 1, %s16
      %p293 = scmp.lt.s32.totalorder %s16, 3
      %p294 = pnand %p292, %p293
      %p295 = pneg %p294
      // Predicated region
      $region45: #{complex_conv.1} parent=5 // pred_check
        _
      $region46: #{complex_conv.1} parent=5 // pred_check_branch
        %297 = sbr.rel (%p294) target = $region48
      $region47: #{complex_conv.1} parent=5 // pred_region
        %s298 = ssub.s32 %s16, 1
        // Predicated region
        $region49: #{complex_conv.1} parent=47 // pred_check
          %p299 = pneg %p49
        $region50: #{complex_conv.1} parent=47 // pred_check_branch
          %301 = sbr.rel (%p299) target = $region52
        $region51: #{complex_conv.1} parent=47 // pred_region
          %303 = dma.done [#allocation3], 16
        $region52: #{complex_conv.1} parent=47 // pred_fallthru
          _
        // Predicated region
        $region53: #{complex_conv.1} parent=47 // pred_check
          %p304 = pneg %p70
        $region54: #{complex_conv.1} parent=47 // pred_check_branch
          %306 = sbr.rel (%p304) target = $region56
        $region55: #{complex_conv.1} parent=47 // pred_region
          %308 = dma.done [#allocation5], 16
        $region56: #{complex_conv.1} parent=47 // pred_fallthru
          _
        // Predicated region
        $region57: #{complex_conv.1} parent=47 // pred_check
          %p309 = pneg %p91
        $region58: #{complex_conv.1} parent=47 // pred_check_branch
          %311 = sbr.rel (%p309) target = $region60
        $region59: #{complex_conv.1} parent=47 // pred_region
          %313 = dma.done [#allocation5], 16
        $region60: #{complex_conv.1} parent=47 // pred_fallthru
          _
        // Predicated region
        $region61: #{complex_conv.1} parent=47 // pred_check
          %p314 = pneg %p112
        $region62: #{complex_conv.1} parent=47 // pred_check_branch
          %316 = sbr.rel (%p314) target = $region64
        $region63: #{complex_conv.1} parent=47 // pred_region
          %318 = dma.done [#allocation8], 16
        $region64: #{complex_conv.1} parent=47 // pred_fallthru
          _
        // Predicated region
        $region65: #{complex_conv.1} parent=47 // pred_check
          %p319 = pneg %p133
        $region66: #{complex_conv.1} parent=47 // pred_check_branch
          %321 = sbr.rel (%p319) target = $region68
        $region67: #{complex_conv.1} parent=47 // pred_region
          %323 = dma.done [#allocation8], 16
        $region68: #{complex_conv.1} parent=47 // pred_fallthru
          _
        %324 = sfence
        %p325 = pneg %p49
        %p326 = pneg %p46
        %p327 = pneg %p70
        %p328 = pneg %p67
        %p329 = pneg %p91
        %p330 = pneg %p88
        %p331 = pneg %p112
        %p332 = pneg %p109
        %p333 = pneg %p133
        %p334 = pneg %p130
        %p335 = pneg %p154
        %p336 = pneg %p151
        %p337 = scmp.lt.s32.totalorder %s25, 1
        %s338 = scalar_select %p337, %s25, 1
        %p339 = scmp.lt.s32.totalorder %s26, 0
        %s340 = scalar_select %p339, %s26, 0
        %s341 = smul.addr %s338, 8
        %s342 = sadd.s32 %s340, %s341
        %s343 = scalar_lea.vmem %s6, %s342
        %p344 = pneg %p182
        %p345 = pneg %p179
        %p346 = pneg %p210
        %p347 = pneg %p207
        %p348 = scmp.lt.s32.totalorder %s25, 1
        %s349 = scalar_select %p348, %s25, 1
        %p350 = scmp.lt.s32.totalorder %s26, 0
        %s351 = scalar_select %p350, %s26, 0
        %s352 = smul.addr %s349, 8
        %s353 = sadd.s32 %s351, %s352
        %s354 = scalar_lea.vmem %s7, %s353
        %p355 = scmp.lt.s32.totalorder %s25, 1
        %s356 = scalar_select %p355, %s25, 1
        %p357 = scmp.lt.s32.totalorder %s26, 0
        %s358 = scalar_select %p357, %s26, 0
        %s359 = smul.addr %s356, 8
        %s360 = sadd.s32 %s358, %s359
        %s361 = scalar_lea.vmem %s6, %s360
        %p362 = scmp.lt.s32.totalorder %s25, 1
        %s363 = scalar_select %p362, %s25, 1
        %p364 = scmp.lt.s32.totalorder %s26, 0
        %s365 = scalar_select %p364, %s26, 0
        %s366 = smul.addr %s363, 8
        %s367 = sadd.s32 %s365, %s366
        %s368 = scalar_lea.vmem %s7, %s367
        %v369 = vld [vmem:[%s5] sm:$0x1]
        %vm370 = vcmp.ge.s32.totalorder %v369, 1
        %vm371 = vcmp.lt.s32.totalorder %v369, 15
        %v372 = vld [vmem:[%s361] sm:$0x1]
        %s373 = scalar_lea.vmem %s361, 1
        %v374 = vld [vmem:[%s373] sm:$0x1]
        %375 = vrot.lane.b32.xlu0 %v372, 1
        %v376 = vpop.permute.xlu0 %375
        %v377 = vsel %vm370, %v376, 0.0
        %378 = vrot.lane.b32.xlu0 %v374, 1
        %v379 = vpop.permute.xlu0 %378
        %v380 = vsel %vm370, %v379, 0.0
        %v381 = vadd.f32 %v377, %v380
        %v382 = vadd.f32 %v372, %v374
        %383 = vrot.lane.b32.xlu0 %v372, 127
        %v384 = vpop.permute.xlu0 %383
        %v385 = vsel %vm371, %v384, 0.0
        %386 = vrot.lane.b32.xlu0 %v374, 127
        %v387 = vpop.permute.xlu0 %386
        %v388 = vsel %vm371, %v387, 0.0
        %v389 = vadd.f32 %v385, %v388
        %s390 = scalar_lea.vmem %s361, 2
        %v391 = vld [vmem:[%s390] sm:$0x1]
        %s392 = scalar_lea.vmem %s361, 3
        %v393 = vld [vmem:[%s392] sm:$0x1]
        %394 = vrot.lane.b32.xlu0 %v391, 1
        %v395 = vpop.permute.xlu0 %394
        %v396 = vsel %vm370, %v395, 0.0
        %397 = vrot.lane.b32.xlu0 %v393, 1
        %v398 = vpop.permute.xlu0 %397
        %v399 = vsel %vm370, %v398, 0.0
        %v400 = vadd.f32 %v396, %v399
        %v401 = vadd.f32 %v391, %v393
        %402 = vrot.lane.b32.xlu0 %v391, 127
        %v403 = vpop.permute.xlu0 %402
        %v404 = vsel %vm371, %v403, 0.0
        %405 = vrot.lane.b32.xlu0 %v393, 127
        %v406 = vpop.permute.xlu0 %405
        %v407 = vsel %vm371, %v406, 0.0
        %v408 = vadd.f32 %v404, %v407
        %s409 = scalar_lea.vmem %s361, 4
        %v410 = vld [vmem:[%s409] sm:$0x1]
        %s411 = scalar_lea.vmem %s361, 5
        %v412 = vld [vmem:[%s411] sm:$0x1]
        %413 = vrot.lane.b32.xlu0 %v410, 1
        %v414 = vpop.permute.xlu0 %413
        %v415 = vsel %vm370, %v414, 0.0
        %416 = vrot.lane.b32.xlu0 %v412, 1
        %v417 = vpop.permute.xlu0 %416
        %v418 = vsel %vm370, %v417, 0.0
        %v419 = vadd.f32 %v415, %v418
        %v420 = vadd.f32 %v410, %v412
        %421 = vrot.lane.b32.xlu0 %v410, 127
        %v422 = vpop.permute.xlu0 %421
        %v423 = vsel %vm371, %v422, 0.0
        %424 = vrot.lane.b32.xlu0 %v412, 127
        %v425 = vpop.permute.xlu0 %424
        %v426 = vsel %vm371, %v425, 0.0
        %v427 = vadd.f32 %v423, %v426
        %s428 = scalar_lea.vmem %s361, 6
        %v429 = vld [vmem:[%s428] sm:$0x1]
        %s430 = scalar_lea.vmem %s361, 7
        %v431 = vld [vmem:[%s430] sm:$0x1]
        %432 = vrot.lane.b32.xlu0 %v429, 1
        %v433 = vpop.permute.xlu0 %432
        %v434 = vsel %vm370, %v433, 0.0
        %435 = vrot.lane.b32.xlu0 %v431, 1
        %v436 = vpop.permute.xlu0 %435
        %v437 = vsel %vm370, %v436, 0.0
        %v438 = vadd.f32 %v434, %v437
        %v439 = vadd.f32 %v429, %v431
        %440 = vrot.lane.b32.xlu0 %v429, 127
        %v441 = vpop.permute.xlu0 %440
        %v442 = vsel %vm371, %v441, 0.0
        %443 = vrot.lane.b32.xlu0 %v431, 127
        %v444 = vpop.permute.xlu0 %443
        %v445 = vsel %vm371, %v444, 0.0
        %v446 = vadd.f32 %v442, %v445
        %s447 = sld [smem:[#allocation2]]
        %s448 = sld [smem:[#allocation4]]
        %s449 = sld [smem:[#allocation6]]
        %v450 = vstv %s447
        %v451 = vmul.f32 %v450, %v381
        %v452 = vstv %s448
        %v453 = vmul.f32 %v452, %v380
        %v454 = vadd.f32 %v451, %v453
        %v455 = vstv %s449
        %v456 = vmul.f32 %v455, %v377
        %v457 = vadd.f32 %v451, %v456
        %s458 = sld [smem:[#allocation2 + $0x1]]
        %s459 = sld [smem:[#allocation4 + $0x1]]
        %s460 = sld [smem:[#allocation6 + $0x1]]
        %v461 = vstv %s458
        %v462 = vmul.f32 %v461, %v382
        %v463 = vstv %s459
        %v464 = vmul.f32 %v463, %v374
        %v465 = vadd.f32 %v462, %v464
        %v466 = vstv %s460
        %v467 = vmul.f32 %v466, %v372
        %v468 = vadd.f32 %v462, %v467
        %v469 = vadd.f32 %v454, %v465
        %v470 = vadd.f32 %v457, %v468
        %s471 = sld [smem:[#allocation2 + $0x2]]
        %s472 = sld [smem:[#allocation4 + $0x2]]
        %s473 = sld [smem:[#allocation6 + $0x2]]
        %v474 = vstv %s471
        %v475 = vmul.f32 %v474, %v389
        %v476 = vstv %s472
        %v477 = vmul.f32 %v476, %v388
        %v478 = vadd.f32 %v475, %v477
        %v479 = vstv %s473
        %v480 = vmul.f32 %v479, %v385
        %v481 = vadd.f32 %v475, %v480
        %v482 = vadd.f32 %v469, %v478
        %v483 = vadd.f32 %v470, %v481
        %s484 = sld [smem:[#allocation2 + $0x3]]
        %s485 = sld [smem:[#allocation4 + $0x3]]
        %s486 = sld [smem:[#allocation6 + $0x3]]
        %v487 = vstv %s484
        %v488 = vmul.f32 %v487, %v400
        %v489 = vstv %s485
        %v490 = vmul.f32 %v489, %v399
        %v491 = vadd.f32 %v488, %v490
        %v492 = vstv %s486
        %v493 = vmul.f32 %v492, %v396
        %v494 = vadd.f32 %v488, %v493
        %v495 = vadd.f32 %v482, %v491
        %v496 = vadd.f32 %v483, %v494
        %s497 = sld [smem:[#allocation2 + $0x4]]
        %s498 = sld [smem:[#allocation4 + $0x4]]
        %s499 = sld [smem:[#allocation6 + $0x4]]
        %v500 = vstv %s497
        %v501 = vmul.f32 %v500, %v401
        %v502 = vstv %s498
        %v503 = vmul.f32 %v502, %v393
        %v504 = vadd.f32 %v501, %v503
        %v505 = vstv %s499
        %v506 = vmul.f32 %v505, %v391
        %v507 = vadd.f32 %v501, %v506
        %v508 = vadd.f32 %v495, %v504
        %v509 = vadd.f32 %v496, %v507
        %s510 = sld [smem:[#allocation2 + $0x5]]
        %s511 = sld [smem:[#allocation4 + $0x5]]
        %s512 = sld [smem:[#allocation6 + $0x5]]
        %v513 = vstv %s510
        %v514 = vmul.f32 %v513, %v408
        %v515 = vstv %s511
        %v516 = vmul.f32 %v515, %v407
        %v517 = vadd.f32 %v514, %v516
        %v518 = vstv %s512
        %v519 = vmul.f32 %v518, %v404
        %v520 = vadd.f32 %v514, %v519
        %v521 = vadd.f32 %v508, %v517
        %v522 = vadd.f32 %v509, %v520
        %s523 = sld [smem:[#allocation2 + $0x6]]
        %s524 = sld [smem:[#allocation4 + $0x6]]
        %s525 = sld [smem:[#allocation6 + $0x6]]
        %v526 = vstv %s523
        %v527 = vmul.f32 %v526, %v419
        %v528 = vstv %s524
        %v529 = vmul.f32 %v528, %v418
        %v530 = vadd.f32 %v527, %v529
        %v531 = vstv %s525
        %v532 = vmul.f32 %v531, %v415
        %v533 = vadd.f32 %v527, %v532
        %v534 = vadd.f32 %v521, %v530
        %v535 = vadd.f32 %v522, %v533
        %s536 = sld [smem:[#allocation2 + $0x7]]
        %s537 = sld [smem:[#allocation4 + $0x7]]
        %s538 = sld [smem:[#allocation6 + $0x7]]
        %v539 = vstv %s536
        %v540 = vmul.f32 %v539, %v420
        %v541 = vstv %s537
        %v542 = vmul.f32 %v541, %v412
        %v543 = vadd.f32 %v540, %v542
        %v544 = vstv %s538
        %v545 = vmul.f32 %v544, %v410
        %v546 = vadd.f32 %v540, %v545
        %v547 = vadd.f32 %v534, %v543
        %v548 = vadd.f32 %v535, %v546
        %s549 = sld [smem:[#allocation2 + $0x8]]
        %s550 = sld [smem:[#allocation4 + $0x8]]
        %s551 = sld [smem:[#allocation6 + $0x8]]
        %v552 = vstv %s549
        %v553 = vmul.f32 %v552, %v427
        %v554 = vstv %s550
        %v555 = vmul.f32 %v554, %v426
        %v556 = vadd.f32 %v553, %v555
        %v557 = vstv %s551
        %v558 = vmul.f32 %v557, %v423
        %v559 = vadd.f32 %v553, %v558
        %v560 = vadd.f32 %v547, %v556
        %v561 = vadd.f32 %v548, %v559
        %s562 = sld [smem:[#allocation2 + $0x9]]
        %s563 = sld [smem:[#allocation4 + $0x9]]
        %s564 = sld [smem:[#allocation6 + $0x9]]
        %v565 = vstv %s562
        %v566 = vmul.f32 %v565, %v438
        %v567 = vstv %s563
        %v568 = vmul.f32 %v567, %v437
        %v569 = vadd.f32 %v566, %v568
        %v570 = vstv %s564
        %v571 = vmul.f32 %v570, %v434
        %v572 = vadd.f32 %v566, %v571
        %v573 = vadd.f32 %v560, %v569
        %v574 = vadd.f32 %v561, %v572
        %s575 = sld [smem:[#allocation2 + $0xa]]
        %s576 = sld [smem:[#allocation4 + $0xa]]
        %s577 = sld [smem:[#allocation6 + $0xa]]
        %v578 = vstv %s575
        %v579 = vmul.f32 %v578, %v439
        %v580 = vstv %s576
        %v581 = vmul.f32 %v580, %v431
        %v582 = vadd.f32 %v579, %v581
        %v583 = vstv %s577
        %v584 = vmul.f32 %v583, %v429
        %v585 = vadd.f32 %v579, %v584
        %v586 = vadd.f32 %v573, %v582
        %v587 = vadd.f32 %v574, %v585
        %s588 = sld [smem:[#allocation2 + $0xb]]
        %s589 = sld [smem:[#allocation4 + $0xb]]
        %s590 = sld [smem:[#allocation6 + $0xb]]
        %v591 = vstv %s588
        %v592 = vmul.f32 %v591, %v446
        %v593 = vstv %s589
        %v594 = vmul.f32 %v593, %v445
        %v595 = vadd.f32 %v592, %v594
        %v596 = vstv %s590
        %v597 = vmul.f32 %v596, %v442
        %v598 = vadd.f32 %v592, %v597
        %v599 = vadd.f32 %v586, %v595
        %v600 = vadd.f32 %v587, %v598
        %s601 = sld [smem:[#allocation7]]
        %v602 = vstv %s601
        %v603 = vadd.f32 %v599, %v602
        %604 = vst [vmem:[%s368] sm:$0x1] %v603
        %s605 = sld [smem:[#allocation9]]
        %v606 = vstv %s605
        %v607 = vadd.f32 %v600, %v606
        %s608 = scalar_lea.vmem %s368, 1
        %609 = vst [vmem:[%s608] sm:$0x1] %v607
        %s610 = sld [smem:[#allocation2 + $0xc]]
        %s611 = sld [smem:[#allocation4 + $0xc]]
        %s612 = sld [smem:[#allocation6 + $0xc]]
        %v613 = vstv %s610
        %v614 = vmul.f32 %v613, %v381
        %v615 = vstv %s611
        %v616 = vmul.f32 %v615, %v380
        %v617 = vadd.f32 %v614, %v616
        %v618 = vstv %s612
        %v619 = vmul.f32 %v618, %v377
        %v620 = vadd.f32 %v614, %v619
        %s621 = sld [smem:[#allocation2 + $0xd]]
        %s622 = sld [smem:[#allocation4 + $0xd]]
        %s623 = sld [smem:[#allocation6 + $0xd]]
        %v624 = vstv %s621
        %v625 = vmul.f32 %v624, %v382
        %v626 = vstv %s622
        %v627 = vmul.f32 %v626, %v374
        %v628 = vadd.f32 %v625, %v627
        %v629 = vstv %s623
        %v630 = vmul.f32 %v629, %v372
        %v631 = vadd.f32 %v625, %v630
        %v632 = vadd.f32 %v617, %v628
        %v633 = vadd.f32 %v620, %v631
        %s634 = sld [smem:[#allocation2 + $0xe]]
        %s635 = sld [smem:[#allocation4 + $0xe]]
        %s636 = sld [smem:[#allocation6 + $0xe]]
        %v637 = vstv %s634
        %v638 = vmul.f32 %v637, %v389
        %v639 = vstv %s635
        %v640 = vmul.f32 %v639, %v388
        %v641 = vadd.f32 %v638, %v640
        %v642 = vstv %s636
        %v643 = vmul.f32 %v642, %v385
        %v644 = vadd.f32 %v638, %v643
        %v645 = vadd.f32 %v632, %v641
        %v646 = vadd.f32 %v633, %v644
        %s647 = sld [smem:[#allocation2 + $0xf]]
        %s648 = sld [smem:[#allocation4 + $0xf]]
        %s649 = sld [smem:[#allocation6 + $0xf]]
        %v650 = vstv %s647
        %v651 = vmul.f32 %v650, %v400
        %v652 = vstv %s648
        %v653 = vmul.f32 %v652, %v399
        %v654 = vadd.f32 %v651, %v653
        %v655 = vstv %s649
        %v656 = vmul.f32 %v655, %v396
        %v657 = vadd.f32 %v651, %v656
        %v658 = vadd.f32 %v645, %v654
        %v659 = vadd.f32 %v646, %v657
        %s660 = sld [smem:[#allocation2 + $0x10]]
        %s661 = sld [smem:[#allocation4 + $0x10]]
        %s662 = sld [smem:[#allocation6 + $0x10]]
        %v663 = vstv %s660
        %v664 = vmul.f32 %v663, %v401
        %v665 = vstv %s661
        %v666 = vmul.f32 %v665, %v393
        %v667 = vadd.f32 %v664, %v666
        %v668 = vstv %s662
        %v669 = vmul.f32 %v668, %v391
        %v670 = vadd.f32 %v664, %v669
        %v671 = vadd.f32 %v658, %v667
        %v672 = vadd.f32 %v659, %v670
        %s673 = sld [smem:[#allocation2 + $0x11]]
        %s674 = sld [smem:[#allocation4 + $0x11]]
        %s675 = sld [smem:[#allocation6 + $0x11]]
        %v676 = vstv %s673
        %v677 = vmul.f32 %v676, %v408
        %v678 = vstv %s674
        %v679 = vmul.f32 %v678, %v407
        %v680 = vadd.f32 %v677, %v679
        %v681 = vstv %s675
        %v682 = vmul.f32 %v681, %v404
        %v683 = vadd.f32 %v677, %v682
        %v684 = vadd.f32 %v671, %v680
        %v685 = vadd.f32 %v672, %v683
        %s686 = sld [smem:[#allocation2 + $0x12]]
        %s687 = sld [smem:[#allocation4 + $0x12]]
        %s688 = sld [smem:[#allocation6 + $0x12]]
        %v689 = vstv %s686
        %v690 = vmul.f32 %v689, %v419
        %v691 = vstv %s687
        %v692 = vmul.f32 %v691, %v418
        %v693 = vadd.f32 %v690, %v692
        %v694 = vstv %s688
        %v695 = vmul.f32 %v694, %v415
        %v696 = vadd.f32 %v690, %v695
        %v697 = vadd.f32 %v684, %v693
        %v698 = vadd.f32 %v685, %v696
        %s699 = sld [smem:[#allocation2 + $0x13]]
        %s700 = sld [smem:[#allocation4 + $0x13]]
        %s701 = sld [smem:[#allocation6 + $0x13]]
        %v702 = vstv %s699
        %v703 = vmul.f32 %v702, %v420
        %v704 = vstv %s700
        %v705 = vmul.f32 %v704, %v412
        %v706 = vadd.f32 %v703, %v705
        %v707 = vstv %s701
        %v708 = vmul.f32 %v707, %v410
        %v709 = vadd.f32 %v703, %v708
        %v710 = vadd.f32 %v697, %v706
        %v711 = vadd.f32 %v698, %v709
        %s712 = sld [smem:[#allocation2 + $0x14]]
        %s713 = sld [smem:[#allocation4 + $0x14]]
        %s714 = sld [smem:[#allocation6 + $0x14]]
        %v715 = vstv %s712
        %v716 = vmul.f32 %v715, %v427
        %v717 = vstv %s713
        %v718 = vmul.f32 %v717, %v426
        %v719 = vadd.f32 %v716, %v718
        %v720 = vstv %s714
        %v721 = vmul.f32 %v720, %v423
        %v722 = vadd.f32 %v716, %v721
        %v723 = vadd.f32 %v710, %v719
        %v724 = vadd.f32 %v711, %v722
        %s725 = sld [smem:[#allocation2 + $0x15]]
        %s726 = sld [smem:[#allocation4 + $0x15]]
        %s727 = sld [smem:[#allocation6 + $0x15]]
        %v728 = vstv %s725
        %v729 = vmul.f32 %v728, %v438
        %v730 = vstv %s726
        %v731 = vmul.f32 %v730, %v437
        %v732 = vadd.f32 %v729, %v731
        %v733 = vstv %s727
        %v734 = vmul.f32 %v733, %v434
        %v735 = vadd.f32 %v729, %v734
        %v736 = vadd.f32 %v723, %v732
        %v737 = vadd.f32 %v724, %v735
        %s738 = sld [smem:[#allocation2 + $0x16]]
        %s739 = sld [smem:[#allocation4 + $0x16]]
        %s740 = sld [smem:[#allocation6 + $0x16]]
        %v741 = vstv %s738
        %v742 = vmul.f32 %v741, %v439
        %v743 = vstv %s739
        %v744 = vmul.f32 %v743, %v431
        %v745 = vadd.f32 %v742, %v744
        %v746 = vstv %s740
        %v747 = vmul.f32 %v746, %v429
        %v748 = vadd.f32 %v742, %v747
        %v749 = vadd.f32 %v736, %v745
        %v750 = vadd.f32 %v737, %v748
        %s751 = sld [smem:[#allocation2 + $0x17]]
        %s752 = sld [smem:[#allocation4 + $0x17]]
        %s753 = sld [smem:[#allocation6 + $0x17]]
        %v754 = vstv %s751
        %v755 = vmul.f32 %v754, %v446
        %v756 = vstv %s752
        %v757 = vmul.f32 %v756, %v445
        %v758 = vadd.f32 %v755, %v757
        %v759 = vstv %s753
        %v760 = vmul.f32 %v759, %v442
        %v761 = vadd.f32 %v755, %v760
        %v762 = vadd.f32 %v749, %v758
        %v763 = vadd.f32 %v750, %v761
        %s764 = sld [smem:[#allocation7 + $0x1]]
        %v765 = vstv %s764
        %v766 = vadd.f32 %v762, %v765
        %s767 = scalar_lea.vmem %s368, 2
        %768 = vst [vmem:[%s767] sm:$0x1] %v766
        %s769 = sld [smem:[#allocation9 + $0x1]]
        %v770 = vstv %s769
        %v771 = vadd.f32 %v763, %v770
        %s772 = scalar_lea.vmem %s368, 3
        %773 = vst [vmem:[%s772] sm:$0x1] %v771
        %s774 = sld [smem:[#allocation2 + $0x18]]
        %s775 = sld [smem:[#allocation4 + $0x18]]
        %s776 = sld [smem:[#allocation6 + $0x18]]
        %v777 = vstv %s774
        %v778 = vmul.f32 %v777, %v381
        %v779 = vstv %s775
        %v780 = vmul.f32 %v779, %v380
        %v781 = vadd.f32 %v778, %v780
        %v782 = vstv %s776
        %v783 = vmul.f32 %v782, %v377
        %v784 = vadd.f32 %v778, %v783
        %s785 = sld [smem:[#allocation2 + $0x19]]
        %s786 = sld [smem:[#allocation4 + $0x19]]
        %s787 = sld [smem:[#allocation6 + $0x19]]
        %v788 = vstv %s785
        %v789 = vmul.f32 %v788, %v382
        %v790 = vstv %s786
        %v791 = vmul.f32 %v790, %v374
        %v792 = vadd.f32 %v789, %v791
        %v793 = vstv %s787
        %v794 = vmul.f32 %v793, %v372
        %v795 = vadd.f32 %v789, %v794
        %v796 = vadd.f32 %v781, %v792
        %v797 = vadd.f32 %v784, %v795
        %s798 = sld [smem:[#allocation2 + $0x1a]]
        %s799 = sld [smem:[#allocation4 + $0x1a]]
        %s800 = sld [smem:[#allocation6 + $0x1a]]
        %v801 = vstv %s798
        %v802 = vmul.f32 %v801, %v389
        %v803 = vstv %s799
        %v804 = vmul.f32 %v803, %v388
        %v805 = vadd.f32 %v802, %v804
        %v806 = vstv %s800
        %v807 = vmul.f32 %v806, %v385
        %v808 = vadd.f32 %v802, %v807
        %v809 = vadd.f32 %v796, %v805
        %v810 = vadd.f32 %v797, %v808
        %s811 = sld [smem:[#allocation2 + $0x1b]]
        %s812 = sld [smem:[#allocation4 + $0x1b]]
        %s813 = sld [smem:[#allocation6 + $0x1b]]
        %v814 = vstv %s811
        %v815 = vmul.f32 %v814, %v400
        %v816 = vstv %s812
        %v817 = vmul.f32 %v816, %v399
        %v818 = vadd.f32 %v815, %v817
        %v819 = vstv %s813
        %v820 = vmul.f32 %v819, %v396
        %v821 = vadd.f32 %v815, %v820
        %v822 = vadd.f32 %v809, %v818
        %v823 = vadd.f32 %v810, %v821
        %s824 = sld [smem:[#allocation2 + $0x1c]]
        %s825 = sld [smem:[#allocation4 + $0x1c]]
        %s826 = sld [smem:[#allocation6 + $0x1c]]
        %v827 = vstv %s824
        %v828 = vmul.f32 %v827, %v401
        %v829 = vstv %s825
        %v830 = vmul.f32 %v829, %v393
        %v831 = vadd.f32 %v828, %v830
        %v832 = vstv %s826
        %v833 = vmul.f32 %v832, %v391
        %v834 = vadd.f32 %v828, %v833
        %v835 = vadd.f32 %v822, %v831
        %v836 = vadd.f32 %v823, %v834
        %s837 = sld [smem:[#allocation2 + $0x1d]]
        %s838 = sld [smem:[#allocation4 + $0x1d]]
        %s839 = sld [smem:[#allocation6 + $0x1d]]
        %v840 = vstv %s837
        %v841 = vmul.f32 %v840, %v408
        %v842 = vstv %s838
        %v843 = vmul.f32 %v842, %v407
        %v844 = vadd.f32 %v841, %v843
        %v845 = vstv %s839
        %v846 = vmul.f32 %v845, %v404
        %v847 = vadd.f32 %v841, %v846
        %v848 = vadd.f32 %v835, %v844
        %v849 = vadd.f32 %v836, %v847
        %s850 = sld [smem:[#allocation2 + $0x1e]]
        %s851 = sld [smem:[#allocation4 + $0x1e]]
        %s852 = sld [smem:[#allocation6 + $0x1e]]
        %v853 = vstv %s850
        %v854 = vmul.f32 %v853, %v419
        %v855 = vstv %s851
        %v856 = vmul.f32 %v855, %v418
        %v857 = vadd.f32 %v854, %v856
        %v858 = vstv %s852
        %v859 = vmul.f32 %v858, %v415
        %v860 = vadd.f32 %v854, %v859
        %v861 = vadd.f32 %v848, %v857
        %v862 = vadd.f32 %v849, %v860
        %s863 = sld [smem:[#allocation2 + $0x1f]]
        %s864 = sld [smem:[#allocation4 + $0x1f]]
        %s865 = sld [smem:[#allocation6 + $0x1f]]
        %v866 = vstv %s863
        %v867 = vmul.f32 %v866, %v420
        %v868 = vstv %s864
        %v869 = vmul.f32 %v868, %v412
        %v870 = vadd.f32 %v867, %v869
        %v871 = vstv %s865
        %v872 = vmul.f32 %v871, %v410
        %v873 = vadd.f32 %v867, %v872
        %v874 = vadd.f32 %v861, %v870
        %v875 = vadd.f32 %v862, %v873
        %s876 = sld [smem:[#allocation2 + $0x20]]
        %s877 = sld [smem:[#allocation4 + $0x20]]
        %s878 = sld [smem:[#allocation6 + $0x20]]
        %v879 = vstv %s876
        %v880 = vmul.f32 %v879, %v427
        %v881 = vstv %s877
        %v882 = vmul.f32 %v881, %v426
        %v883 = vadd.f32 %v880, %v882
        %v884 = vstv %s878
        %v885 = vmul.f32 %v884, %v423
        %v886 = vadd.f32 %v880, %v885
        %v887 = vadd.f32 %v874, %v883
        %v888 = vadd.f32 %v875, %v886
        %s889 = sld [smem:[#allocation2 + $0x21]]
        %s890 = sld [smem:[#allocation4 + $0x21]]
        %s891 = sld [smem:[#allocation6 + $0x21]]
        %v892 = vstv %s889
        %v893 = vmul.f32 %v892, %v438
        %v894 = vstv %s890
        %v895 = vmul.f32 %v894, %v437
        %v896 = vadd.f32 %v893, %v895
        %v897 = vstv %s891
        %v898 = vmul.f32 %v897, %v434
        %v899 = vadd.f32 %v893, %v898
        %v900 = vadd.f32 %v887, %v896
        %v901 = vadd.f32 %v888, %v899
        %s902 = sld [smem:[#allocation2 + $0x22]]
        %s903 = sld [smem:[#allocation4 + $0x22]]
        %s904 = sld [smem:[#allocation6 + $0x22]]
        %v905 = vstv %s902
        %v906 = vmul.f32 %v905, %v439
        %v907 = vstv %s903
        %v908 = vmul.f32 %v907, %v431
        %v909 = vadd.f32 %v906, %v908
        %v910 = vstv %s904
        %v911 = vmul.f32 %v910, %v429
        %v912 = vadd.f32 %v906, %v911
        %v913 = vadd.f32 %v900, %v909
        %v914 = vadd.f32 %v901, %v912
        %s915 = sld [smem:[#allocation2 + $0x23]]
        %s916 = sld [smem:[#allocation4 + $0x23]]
        %s917 = sld [smem:[#allocation6 + $0x23]]
        %v918 = vstv %s915
        %v919 = vmul.f32 %v918, %v446
        %v920 = vstv %s916
        %v921 = vmul.f32 %v920, %v445
        %v922 = vadd.f32 %v919, %v921
        %v923 = vstv %s917
        %v924 = vmul.f32 %v923, %v442
        %v925 = vadd.f32 %v919, %v924
        %v926 = vadd.f32 %v913, %v922
        %v927 = vadd.f32 %v914, %v925
        %s928 = sld [smem:[#allocation7 + $0x2]]
        %v929 = vstv %s928
        %v930 = vadd.f32 %v926, %v929
        %s931 = scalar_lea.vmem %s368, 4
        %932 = vst [vmem:[%s931] sm:$0x1] %v930
        %s933 = sld [smem:[#allocation9 + $0x2]]
        %v934 = vstv %s933
        %v935 = vadd.f32 %v927, %v934
        %s936 = scalar_lea.vmem %s368, 5
        %937 = vst [vmem:[%s936] sm:$0x1] %v935
        %s938 = sld [smem:[#allocation2 + $0x24]]
        %s939 = sld [smem:[#allocation4 + $0x24]]
        %s940 = sld [smem:[#allocation6 + $0x24]]
        %v941 = vstv %s938
        %v942 = vmul.f32 %v941, %v381
        %v943 = vstv %s939
        %v944 = vmul.f32 %v943, %v380
        %v945 = vadd.f32 %v942, %v944
        %v946 = vstv %s940
        %v947 = vmul.f32 %v946, %v377
        %v948 = vadd.f32 %v942, %v947
        %s949 = sld [smem:[#allocation2 + $0x25]]
        %s950 = sld [smem:[#allocation4 + $0x25]]
        %s951 = sld [smem:[#allocation6 + $0x25]]
        %v952 = vstv %s949
        %v953 = vmul.f32 %v952, %v382
        %v954 = vstv %s950
        %v955 = vmul.f32 %v954, %v374
        %v956 = vadd.f32 %v953, %v955
        %v957 = vstv %s951
        %v958 = vmul.f32 %v957, %v372
        %v959 = vadd.f32 %v953, %v958
        %v960 = vadd.f32 %v945, %v956
        %v961 = vadd.f32 %v948, %v959
        %s962 = sld [smem:[#allocation2 + $0x26]]
        %s963 = sld [smem:[#allocation4 + $0x26]]
        %s964 = sld [smem:[#allocation6 + $0x26]]
        %v965 = vstv %s962
        %v966 = vmul.f32 %v965, %v389
        %v967 = vstv %s963
        %v968 = vmul.f32 %v967, %v388
        %v969 = vadd.f32 %v966, %v968
        %v970 = vstv %s964
        %v971 = vmul.f32 %v970, %v385
        %v972 = vadd.f32 %v966, %v971
        %v973 = vadd.f32 %v960, %v969
        %v974 = vadd.f32 %v961, %v972
        %s975 = sld [smem:[#allocation2 + $0x27]]
        %s976 = sld [smem:[#allocation4 + $0x27]]
        %s977 = sld [smem:[#allocation6 + $0x27]]
        %v978 = vstv %s975
        %v979 = vmul.f32 %v978, %v400
        %v980 = vstv %s976
        %v981 = vmul.f32 %v980, %v399
        %v982 = vadd.f32 %v979, %v981
        %v983 = vstv %s977
        %v984 = vmul.f32 %v983, %v396
        %v985 = vadd.f32 %v979, %v984
        %v986 = vadd.f32 %v973, %v982
        %v987 = vadd.f32 %v974, %v985
        %s988 = sld [smem:[#allocation2 + $0x28]]
        %s989 = sld [smem:[#allocation4 + $0x28]]
        %s990 = sld [smem:[#allocation6 + $0x28]]
        %v991 = vstv %s988
        %v992 = vmul.f32 %v991, %v401
        %v993 = vstv %s989
        %v994 = vmul.f32 %v993, %v393
        %v995 = vadd.f32 %v992, %v994
        %v996 = vstv %s990
        %v997 = vmul.f32 %v996, %v391
        %v998 = vadd.f32 %v992, %v997
        %v999 = vadd.f32 %v986, %v995
        %v1000 = vadd.f32 %v987, %v998
        %s1001 = sld [smem:[#allocation2 + $0x29]]
        %s1002 = sld [smem:[#allocation4 + $0x29]]
        %s1003 = sld [smem:[#allocation6 + $0x29]]
        %v1004 = vstv %s1001
        %v1005 = vmul.f32 %v1004, %v408
        %v1006 = vstv %s1002
        %v1007 = vmul.f32 %v1006, %v407
        %v1008 = vadd.f32 %v1005, %v1007
        %v1009 = vstv %s1003
        %v1010 = vmul.f32 %v1009, %v404
        %v1011 = vadd.f32 %v1005, %v1010
        %v1012 = vadd.f32 %v999, %v1008
        %v1013 = vadd.f32 %v1000, %v1011
        %s1014 = sld [smem:[#allocation2 + $0x2a]]
        %s1015 = sld [smem:[#allocation4 + $0x2a]]
        %s1016 = sld [smem:[#allocation6 + $0x2a]]
        %v1017 = vstv %s1014
        %v1018 = vmul.f32 %v1017, %v419
        %v1019 = vstv %s1015
        %v1020 = vmul.f32 %v1019, %v418
        %v1021 = vadd.f32 %v1018, %v1020
        %v1022 = vstv %s1016
        %v1023 = vmul.f32 %v1022, %v415
        %v1024 = vadd.f32 %v1018, %v1023
        %v1025 = vadd.f32 %v1012, %v1021
        %v1026 = vadd.f32 %v1013, %v1024
        %s1027 = sld [smem:[#allocation2 + $0x2b]]
        %s1028 = sld [smem:[#allocation4 + $0x2b]]
        %s1029 = sld [smem:[#allocation6 + $0x2b]]
        %v1030 = vstv %s1027
        %v1031 = vmul.f32 %v1030, %v420
        %v1032 = vstv %s1028
        %v1033 = vmul.f32 %v1032, %v412
        %v1034 = vadd.f32 %v1031, %v1033
        %v1035 = vstv %s1029
        %v1036 = vmul.f32 %v1035, %v410
        %v1037 = vadd.f32 %v1031, %v1036
        %v1038 = vadd.f32 %v1025, %v1034
        %v1039 = vadd.f32 %v1026, %v1037
        %s1040 = sld [smem:[#allocation2 + $0x2c]]
        %s1041 = sld [smem:[#allocation4 + $0x2c]]
        %s1042 = sld [smem:[#allocation6 + $0x2c]]
        %v1043 = vstv %s1040
        %v1044 = vmul.f32 %v1043, %v427
        %v1045 = vstv %s1041
        %v1046 = vmul.f32 %v1045, %v426
        %v1047 = vadd.f32 %v1044, %v1046
        %v1048 = vstv %s1042
        %v1049 = vmul.f32 %v1048, %v423
        %v1050 = vadd.f32 %v1044, %v1049
        %v1051 = vadd.f32 %v1038, %v1047
        %v1052 = vadd.f32 %v1039, %v1050
        %s1053 = sld [smem:[#allocation2 + $0x2d]]
        %s1054 = sld [smem:[#allocation4 + $0x2d]]
        %s1055 = sld [smem:[#allocation6 + $0x2d]]
        %v1056 = vstv %s1053
        %v1057 = vmul.f32 %v1056, %v438
        %v1058 = vstv %s1054
        %v1059 = vmul.f32 %v1058, %v437
        %v1060 = vadd.f32 %v1057, %v1059
        %v1061 = vstv %s1055
        %v1062 = vmul.f32 %v1061, %v434
        %v1063 = vadd.f32 %v1057, %v1062
        %v1064 = vadd.f32 %v1051, %v1060
        %v1065 = vadd.f32 %v1052, %v1063
        %s1066 = sld [smem:[#allocation2 + $0x2e]]
        %s1067 = sld [smem:[#allocation4 + $0x2e]]
        %s1068 = sld [smem:[#allocation6 + $0x2e]]
        %v1069 = vstv %s1066
        %v1070 = vmul.f32 %v1069, %v439
        %v1071 = vstv %s1067
        %v1072 = vmul.f32 %v1071, %v431
        %v1073 = vadd.f32 %v1070, %v1072
        %v1074 = vstv %s1068
        %v1075 = vmul.f32 %v1074, %v429
        %v1076 = vadd.f32 %v1070, %v1075
        %v1077 = vadd.f32 %v1064, %v1073
        %v1078 = vadd.f32 %v1065, %v1076
        %s1079 = sld [smem:[#allocation2 + $0x2f]]
        %s1080 = sld [smem:[#allocation4 + $0x2f]]
        %s1081 = sld [smem:[#allocation6 + $0x2f]]
        %v1082 = vstv %s1079
        %v1083 = vmul.f32 %v1082, %v446
        %v1084 = vstv %s1080
        %v1085 = vmul.f32 %v1084, %v445
        %v1086 = vadd.f32 %v1083, %v1085
        %v1087 = vstv %s1081
        %v1088 = vmul.f32 %v1087, %v442
        %v1089 = vadd.f32 %v1083, %v1088
        %v1090 = vadd.f32 %v1077, %v1086
        %v1091 = vadd.f32 %v1078, %v1089
        %s1092 = sld [smem:[#allocation7 + $0x3]]
        %v1093 = vstv %s1092
        %v1094 = vadd.f32 %v1090, %v1093
        %s1095 = scalar_lea.vmem %s368, 6
        %1096 = vst [vmem:[%s1095] sm:$0x1] %v1094
        %s1097 = sld [smem:[#allocation9 + $0x3]]
        %v1098 = vstv %s1097
        %v1099 = vadd.f32 %v1091, %v1098
        %s1100 = scalar_lea.vmem %s368, 7
        %1101 = vst [vmem:[%s1100] sm:$0x1] %v1099
        %p1102 = scmp.lt.s32.totalorder %s25, 1
        %s1103 = scalar_select %p1102, %s25, 1
        %p1104 = scmp.lt.s32.totalorder %s26, 0
        %s1105 = scalar_select %p1104, %s26, 0
        %s1106 = smul.addr %s1103, 8
        %s1107 = sadd.s32 %s1105, %s1106
        %s1108 = scalar_lea.vmem %s7, %s1107
        // Predicated region
        $region69: #{complex_conv.1} parent=47 // pred_check
          %p1109 = pneg %p207
        $region70: #{complex_conv.1} parent=47 // pred_check_branch
          %1111 = sbr.rel (%p1109) target = $region72
        $region71: #{complex_conv.1} parent=47 // pred_region
          _
        $region72: #{complex_conv.1} parent=47 // pred_fallthru
          _
      $region48: #{complex_conv.1} parent=5 // pred_fallthru
        _
      %p1112 = scmp.le.s32.totalorder 2, %s16
      // Predicated region
      $region73: #{complex_conv.1} parent=5 // pred_check
        %p1113 = pneg %p1112
      $region74: #{complex_conv.1} parent=5 // pred_check_branch
        %1115 = sbr.rel (%p1113) target = $region76
      $region75: #{complex_conv.1} parent=5 // pred_region
        %s1116 = ssub.s32 %s16, 2
        // Predicated region
        $region77: #{complex_conv.1} parent=75 // pred_check
          %p1117 = pneg %p213
        $region78: #{complex_conv.1} parent=75 // pred_check_branch
          %1119 = sbr.rel (%p1117) target = $region80
        $region79: #{complex_conv.1} parent=75 // pred_region
          %p1120 = scmp.lt.s32.totalorder %s27, 1
          %s1121 = scalar_select %p1120, %s27, 1
          %p1122 = scmp.lt.s32.totalorder %s28, 0
          %s1123 = scalar_select %p1122, %s28, 0
          %s1124 = smul.addr %s1121, 8
          %s1125 = sadd.s32 %s1123, %s1124
          %s1126 = scalar_lea.vmem %s7, %s1125
        $region80: #{complex_conv.1} parent=75 // pred_fallthru
          _
      $region76: #{complex_conv.1} parent=5 // pred_fallthru
        _
    $region6: #{complex_conv.1} parent=1 // loop_footer
      %s20 = sadd.s32 1, %s16
    $region7: #{complex_conv.1} parent=1 // loop_footer_branch
      %15 = sbr.rel target = $region3
    $region8: #{complex_conv.1} parent=1 // loop_exit
      _
    %1127 = vsyncpa [#allocation3], 1
    %s1128 = scalar_lea.sflag [#allocation3], 1
    %1129 = vsyncpa %s1128, 1
    %1130 = vsyncpa [#allocation5], 1
    %1131 = vsyncpa [#allocation8], 1

</llo_original>
